<compile_context>
chip_gen: v7x
topology: tpu7x:2x2x1
jax: 0.10.0
libtpu: 0.0.40
codegen_flags: <defaults>
</compile_context>

<pallas_src>
import jax
import jax.numpy as jnp
from jax.experimental import pallas as pl
from jax.experimental.pallas import tpu as pltpu


def _round_up(n, m):
    return ((n + m - 1) // m) * m


def _cdiv(a, b):
    return (a + b - 1) // b


def cvae_kernel(x_ref, y_ref, eps_ref,
                w_ex_ref, w_ey_ref, b_enc_ref,
                w_heads_ref, b_heads_ref,
                w_dz_ref, w_dy_ref, b_d1_ref,
                w_out_ref, b_out_ref,
                gen_ref, mulogvar_ref):
    latent_dim = eps_ref.shape[-1]

    x = x_ref[...]          # (TB, 896) bf16, cols 784:896 zero-padded
    y = y_ref[...]          # (TB, n_classes) bf16

    # Encoder: hidden = relu([x, y] @ W_enc + b) == relu(x @ W_ex + y @ W_ey + b)
    h = (jnp.dot(x, w_ex_ref[...], preferred_element_type=jnp.float32)
         + jnp.dot(y, w_ey_ref[...], preferred_element_type=jnp.float32)
         + b_enc_ref[...])
    h = jnp.maximum(h, 0.0)

    # Fused + lane-padded mu/logvar heads: one (H, 128) matmul
    # (columns [0:L)=mu, [L:2L)=logvar, [2L:128)=zeros). Stored f32, lane-dense.
    heads = (jnp.dot(h.astype(jnp.bfloat16), w_heads_ref[...],
                     preferred_element_type=jnp.float32)
             + b_heads_ref[...])                       # (TB, 128) f32
    mulogvar_ref[...] = heads

    mu = heads[:, :latent_dim]
    logvar = heads[:, latent_dim:2 * latent_dim]

    # Reparameterization: z = eps * exp(logvar / 2) + mu   (f32)
    std = jnp.exp(logvar * 0.5)
    z = eps_ref[...] * std + mu

    # Decoder first layer: cat([z, y]) @ W_d1 == z @ W_dz + y @ W_dy
    h2 = (jnp.dot(z.astype(jnp.bfloat16), w_dz_ref[...],
                  preferred_element_type=jnp.float32)
          + jnp.dot(y, w_dy_ref[...], preferred_element_type=jnp.float32)
          + b_d1_ref[...])
    h2 = jnp.maximum(h2, 0.0)

    # Decoder output layer (lane-padded to 896 cols); sigmoid via a single
    # EUP tanh: sigmoid(x) = 0.5 * tanh(0.5 * x) + 0.5. Store bf16.
    logits = (jnp.dot(h2.astype(jnp.bfloat16), w_out_ref[...],
                      preferred_element_type=jnp.float32)
              + b_out_ref[...])
    gen_ref[...] = (0.5 * jnp.tanh(0.5 * logits) + 0.5).astype(gen_ref.dtype)


def init_linear(key, in_dim, out_dim):
    """PyTorch-style nn.Linear init; weight returned as (in_dim, out_dim)."""
    kw, kb = jax.random.split(key)
    bound = 1.0 / jnp.sqrt(jnp.float32(in_dim))
    w = jax.random.uniform(kw, (in_dim, out_dim), jnp.float32, -bound, bound)
    b = jax.random.uniform(kb, (1, out_dim), jnp.float32, -bound, bound)
    return w, b


def make_cvae_params(key, input_dim, hidden_dim, latent_dim, n_classes):
    keys = jax.random.split(key, 5)
    w_enc, b_enc = init_linear(keys[0], input_dim + n_classes, hidden_dim)
    w_mu, b_mu = init_linear(keys[1], hidden_dim, latent_dim)
    w_var, b_var = init_linear(keys[2], hidden_dim, latent_dim)
    w_d1, b_d1 = init_linear(keys[3], latent_dim + n_classes, hidden_dim)
    w_out, b_out = init_linear(keys[4], hidden_dim, input_dim)

    in_pad = _round_up(input_dim, 128)                     # 784 -> 896
    out_pad = _round_up(input_dim, 128)                    # 784 -> 896
    heads_pad = _round_up(2 * latent_dim, 128)             # 16  -> 128

    w_ex = w_enc[:input_dim]
    w_ex_pad = jnp.pad(w_ex, ((0, in_pad - input_dim), (0, 0)))
    w_heads = jnp.concatenate([w_mu, w_var], axis=1)
    b_heads = jnp.concatenate([b_mu, b_var], axis=1)
    w_heads_pad = jnp.pad(w_heads, ((0, 0), (0, heads_pad - 2 * latent_dim)))
    b_heads_pad = jnp.pad(b_heads, ((0, 0), (0, heads_pad - 2 * latent_dim)))
    w_out_pad = jnp.pad(w_out, ((0, 0), (0, out_pad - input_dim)))
    b_out_pad = jnp.pad(b_out, ((0, 0), (0, out_pad - input_dim)))

    return dict(
        # f32 master copies (used by the pure-JAX reference)
        w_enc=w_enc, b_enc=b_enc, w_mu=w_mu, b_mu=b_mu, w_var=w_var,
        b_var=b_var, w_d1=w_d1, b_d1=b_d1, w_out=w_out, b_out=b_out,
        # kernel layout: split / fused / lane-padded, bf16 matmul operands
        w_ex_pad=w_ex_pad.astype(jnp.bfloat16),            # (896, H)
        w_ey=w_enc[input_dim:].astype(jnp.bfloat16),        # (C, H)
        w_heads_pad=w_heads_pad.astype(jnp.bfloat16),       # (H, 128)
        b_heads_pad=b_heads_pad,                            # (1, 128) f32
        w_dz=w_d1[:latent_dim].astype(jnp.bfloat16),        # (L, H)
        w_dy=w_d1[latent_dim:].astype(jnp.bfloat16),        # (C, H)
        w_out_pad=w_out_pad.astype(jnp.bfloat16),           # (H, 896)
        b_out_pad=b_out_pad,                                # (1, 896) f32
    )


def cvae_forward(params, x, y, eps, *, block_b=512):
    """x: (B, 1, 28, 28) NCHW f32; y: (B, n_classes); eps: (B, latent)."""
    B = x.shape[0]
    input_dim = 28 * 28
    n_classes = y.shape[1]
    latent_dim = eps.shape[1]
    hidden_dim = params["w_ex_pad"].shape[1]
    in_pad = params["w_ex_pad"].shape[0]                   # 896
    out_pad = params["w_out_pad"].shape[1]                 # 896
    heads_pad = params["w_heads_pad"].shape[1]             # 128

    x_flat = x.reshape(B, input_dim)                       # == x.view(-1, 28*28)
    x_flat = jnp.pad(x_flat, ((0, 0), (0, in_pad - input_dim)))

    # Batch tile: multiple of 8 sublanes, capped at block_b, chosen so that
    # B_pad - B stays small (minimal wasted HBM traffic on a mem-bound kernel).
    num_tiles = max(1, _cdiv(B, block_b))
    TB = max(8, min(block_b, _round_up(_cdiv(B, num_tiles), 8)))
    # v7x has 2 TensorCores: make sure the "parallel" batch axis has >= 2 grid
    # steps whenever the batch is big enough to split (harmless on v5e/v6e).
    if _round_up(B, TB) // TB == 1 and B > 8:
        TB = _round_up(_cdiv(B, 2), 8)
    B_pad = _round_up(B, TB)
    grid = (B_pad // TB,)

    def pad_rows(a):
        return a if B_pad == B else jnp.pad(a, ((0, B_pad - B), (0, 0)))

    x_bf = pad_rows(x_flat).astype(jnp.bfloat16)
    y_bf = pad_rows(y).astype(jnp.bfloat16)
    eps_p = pad_rows(eps)

    row_spec = lambda feat: pl.BlockSpec((TB, feat), lambda i: (i, 0))
    fix_spec = lambda r, c: pl.BlockSpec((r, c), lambda i: (0, 0))

    # Advisory cost hint for XLA's scheduler around the custom call.
    flops = 2 * B_pad * (in_pad * hidden_dim + n_classes * hidden_dim
                         + hidden_dim * heads_pad
                         + latent_dim * hidden_dim + n_classes * hidden_dim
                         + hidden_dim * out_pad)
    transcendentals = B_pad * (out_pad + latent_dim)
    weight_bytes = sum(int(params[k].size) * params[k].dtype.itemsize
                       for k in ("w_ex_pad", "w_ey", "b_enc", "w_heads_pad",
                                 "b_heads_pad", "w_dz", "w_dy", "b_d1",
                                 "w_out_pad", "b_out_pad")
                       if k in params) if False else 0
    bytes_accessed = int(B_pad * (in_pad * 2 + n_classes * 2 + latent_dim * 4
                                  + out_pad * 2 + heads_pad * 4)) + weight_bytes
    cost = pl.CostEstimate(flops=int(flops),
                           transcendentals=int(transcendentals),
                           bytes_accessed=int(bytes_accessed))

    gen_pad, mulogvar = pl.pallas_call(
        cvae_kernel,
        out_shape=(
            jax.ShapeDtypeStruct((B_pad, out_pad), jnp.bfloat16),   # bf16 image
            jax.ShapeDtypeStruct((B_pad, heads_pad), jnp.float32),  # f32 [mu|logvar|0]
        ),
        grid_spec=pltpu.PrefetchScalarGridSpec(
            num_scalar_prefetch=0,
            grid=grid,
            in_specs=[
                row_spec(in_pad),                          # x (lane-padded)
                row_spec(n_classes),                       # y
                row_spec(latent_dim),                      # eps
                fix_spec(in_pad, hidden_dim),              # w_ex_pad
                fix_spec(n_classes, hidden_dim),           # w_ey
                fix_spec(1, hidden_dim),                   # b_enc
                fix_spec(hidden_dim, heads_pad),           # w_heads_pad
                fix_spec(1, heads_pad),                    # b_heads_pad
                fix_spec(latent_dim, hidden_dim),          # w_dz
                fix_spec(n_classes, hidden_dim),           # w_dy
                fix_spec(1, hidden_dim),                   # b_d1
                fix_spec(hidden_dim, out_pad),             # w_out_pad
                fix_spec(1, out_pad),                      # b_out_pad
            ],
            out_specs=[
                row_spec(out_pad),                         # generated image (padded, bf16)
                row_spec(heads_pad),                       # packed [mu | logvar | 0] f32
            ],
        ),
        compiler_params=pltpu.CompilerParams(
            dimension_semantics=("parallel",),
            vmem_limit_bytes=48 * 1024 * 1024),
        cost_estimate=cost,
    )(x_bf, y_bf, eps_p,
      params["w_ex_pad"], params["w_ey"], params["b_enc"],
      params["w_heads_pad"], params["b_heads_pad"],
      params["w_dz"], params["w_dy"], params["b_d1"],
      params["w_out_pad"], params["b_out_pad"])

    gen = gen_pad[:B, :input_dim].astype(jnp.float32).reshape(B, 1, 28, 28)
    mu = mulogvar[:B, :latent_dim]
    logvar = mulogvar[:B, latent_dim:2 * latent_dim]
    return gen, mu, logvar


def cvae_reference(params, x, y, eps):
    """Pure-JAX f32 reference of the same forward for validation."""
    B = x.shape[0]
    x_flat = x.reshape(B, 28 * 28)
    xy = jnp.concatenate([x_flat, y], axis=1)
    h = jnp.maximum(xy @ params["w_enc"] + params["b_enc"], 0.0)
    mu = h @ params["w_mu"] + params["b_mu"]
    logvar = h @ params["w_var"] + params["b_var"]
    z = eps * jnp.exp(logvar * 0.5) + mu
    zy = jnp.concatenate([z, y], axis=1)
    h2 = jnp.maximum(zy @ params["w_d1"] + params["b_d1"], 0.0)
    gen = jax.nn.sigmoid(h2 @ params["w_out"] + params["b_out"])
    return gen.reshape(B, 1, 28, 28), mu, logvar


if __name__ == "__main__":
    # Small, module-consistent shapes; input_dim is pinned to 28*28 by the
    # forward's hard-coded `x.view(-1, 28*28)`.
    B = 2
    INPUT_DIM = 28 * 28
    HIDDEN_DIM = 32
    LATENT_DIM = 8
    N_CLASSES = 10

    key = jax.random.PRNGKey(0)
    k_params, k_x, k_y, k_eps = jax.random.split(key, 4)

    params = make_cvae_params(k_params, INPUT_DIM, HIDDEN_DIM, LATENT_DIM, N_CLASSES)

    x = jax.random.uniform(k_x, (B, 1, 28, 28), jnp.float32)       # NCHW image
    labels = jax.random.randint(k_y, (B,), 0, N_CLASSES)
    y = jax.nn.one_hot(labels, N_CLASSES, dtype=jnp.float32)       # one-hot labels
    # torch.randn_like(std) -> externally drawn standard-normal noise
    eps = jax.random.normal(k_eps, (B, LATENT_DIM), jnp.float32)

    gen_x, z_mu, z_var = cvae_forward(params, x, y, eps)
    jax.block_until_ready((gen_x, z_mu, z_var))

    # Sanity check against a pure-JAX f32 reference (kernel matmuls are bf16
    # and the generated image is stored in bf16, so tolerances are set
    # accordingly; mu/logvar stay f32 end-to-end).
    ref_gen, ref_mu, ref_var = cvae_reference(params, x, y, eps)
    assert gen_x.shape == (B, 1, 28, 28)
    assert z_mu.shape == (B, LATENT_DIM) and z_var.shape == (B, LATENT_DIM)
    assert jnp.allclose(gen_x, ref_gen, atol=3e-2, rtol=3e-2)
    assert jnp.allclose(z_mu, ref_mu, atol=3e-2, rtol=3e-2)
    assert jnp.allclose(z_var, ref_var, atol=3e-2, rtol=3e-2)

    print("KERNEL_OK")
</pallas_src>

<mosaic_0001>
module attributes {stable_mosaic.version = 11 : i64} {
  func.func @cvae_kernel(%arg0: i32, %arg1: memref<8x896xbf16, #tpu.memory_space<vmem>>, %arg2: memref<8x10xbf16, #tpu.memory_space<vmem>>, %arg3: memref<8x8xf32, #tpu.memory_space<vmem>>, %arg4: memref<896x32xbf16, #tpu.memory_space<vmem>>, %arg5: memref<10x32xbf16, #tpu.memory_space<vmem>>, %arg6: memref<1x32xf32, #tpu.memory_space<vmem>>, %arg7: memref<32x128xbf16, #tpu.memory_space<vmem>>, %arg8: memref<1x128xf32, #tpu.memory_space<vmem>>, %arg9: memref<8x32xbf16, #tpu.memory_space<vmem>>, %arg10: memref<10x32xbf16, #tpu.memory_space<vmem>>, %arg11: memref<1x32xf32, #tpu.memory_space<vmem>>, %arg12: memref<32x896xbf16, #tpu.memory_space<vmem>>, %arg13: memref<1x896xf32, #tpu.memory_space<vmem>>, %arg14: memref<8x896xbf16, #tpu.memory_space<vmem>>, %arg15: memref<8x128xf32, #tpu.memory_space<vmem>>) attributes {dimension_semantics = [#tpu.dimension_semantics<parallel>], iteration_bounds = array<i64: 1>, scalar_prefetch = 0 : i64, scratch_operands = 0 : i64, tpu.core_type = #tpu.core_type<tc>, window_params = [{transform_indices = @transform_0, window_bounds = array<i64: 8, 896>}, {transform_indices = @transform_1, window_bounds = array<i64: 8, 10>}, {transform_indices = @transform_2, window_bounds = array<i64: 8, 8>}, {pipeline_mode = #tpu.pipeline_mode<synchronous>, transform_indices = @transform_3, window_bounds = array<i64: 896, 32>}, {pipeline_mode = #tpu.pipeline_mode<synchronous>, transform_indices = @transform_4, window_bounds = array<i64: 10, 32>}, {pipeline_mode = #tpu.pipeline_mode<synchronous>, transform_indices = @transform_5, window_bounds = array<i64: 1, 32>}, {pipeline_mode = #tpu.pipeline_mode<synchronous>, transform_indices = @transform_6, window_bounds = array<i64: 32, 128>}, {pipeline_mode = #tpu.pipeline_mode<synchronous>, transform_indices = @transform_7, window_bounds = array<i64: 1, 128>}, {pipeline_mode = #tpu.pipeline_mode<synchronous>, transform_indices = @transform_8, window_bounds = array<i64: 8, 32>}, {pipeline_mode = #tpu.pipeline_mode<synchronous>, transform_indices = @transform_9, window_bounds = array<i64: 10, 32>}, {pipeline_mode = #tpu.pipeline_mode<synchronous>, transform_indices = @transform_10, window_bounds = array<i64: 1, 32>}, {pipeline_mode = #tpu.pipeline_mode<synchronous>, transform_indices = @transform_11, window_bounds = array<i64: 32, 896>}, {pipeline_mode = #tpu.pipeline_mode<synchronous>, transform_indices = @transform_12, window_bounds = array<i64: 1, 896>}, {transform_indices = @transform_13, window_bounds = array<i64: 8, 896>}, {transform_indices = @transform_14, window_bounds = array<i64: 8, 128>}]} {
    %c0 = arith.constant 0 : index
    %c0_0 = arith.constant 0 : index
    %0 = vector.load %arg1[%c0, %c0_0] : memref<8x896xbf16, #tpu.memory_space<vmem>>, vector<8x896xbf16>
    %c0_1 = arith.constant 0 : index
    %c0_2 = arith.constant 0 : index
    %1 = vector.load %arg2[%c0_1, %c0_2] : memref<8x10xbf16, #tpu.memory_space<vmem>>, vector<8x10xbf16>
    %c0_3 = arith.constant 0 : index
    %c0_4 = arith.constant 0 : index
    %2 = vector.load %arg4[%c0_3, %c0_4] : memref<896x32xbf16, #tpu.memory_space<vmem>>, vector<896x32xbf16>
    %cst = arith.constant dense<0.000000e+00> : vector<8x32xf32>
    %3 = tpu.matmul %0, %2, %cst {dimension_numbers = #tpu.dot_dimension_numbers<[1], [0], [0], [1], [0, 0, 1, 1], [], []>} : vector<8x896xbf16>, vector<896x32xbf16>, vector<8x32xf32> -> vector<8x32xf32>
    %c0_5 = arith.constant 0 : index
    %c0_6 = arith.constant 0 : index
    %4 = vector.load %arg5[%c0_5, %c0_6] : memref<10x32xbf16, #tpu.memory_space<vmem>>, vector<10x32xbf16>
    %cst_7 = arith.constant dense<0.000000e+00> : vector<8x32xf32>
    %5 = tpu.matmul %1, %4, %cst_7 {dimension_numbers = #tpu.dot_dimension_numbers<[1], [0], [0], [1], [0, 0, 1, 1], [], []>} : vector<8x10xbf16>, vector<10x32xbf16>, vector<8x32xf32> -> vector<8x32xf32>
    %6 = arith.addf %3, %5 : vector<8x32xf32>
    %c0_8 = arith.constant 0 : index
    %c0_9 = arith.constant 0 : index
    %7 = vector.load %arg6[%c0_8, %c0_9] : memref<1x32xf32, #tpu.memory_space<vmem>>, vector<1x32xf32>
    %8 = vector.broadcast %7 : vector<1x32xf32> to vector<8x32xf32>
    %9 = arith.addf %6, %8 : vector<8x32xf32>
    %cst_10 = arith.constant 0.000000e+00 : f32
    %10 = vector.broadcast %cst_10 : f32 to vector<8x32xf32>
    %11 = arith.maximumf %9, %10 : vector<8x32xf32>
    %12 = arith.truncf %11 : vector<8x32xf32> to vector<8x32xbf16>
    %c0_11 = arith.constant 0 : index
    %c0_12 = arith.constant 0 : index
    %13 = vector.load %arg7[%c0_11, %c0_12] : memref<32x128xbf16, #tpu.memory_space<vmem>>, vector<32x128xbf16>
    %cst_13 = arith.constant dense<0.000000e+00> : vector<8x128xf32>
    %14 = tpu.matmul %12, %13, %cst_13 {dimension_numbers = #tpu.dot_dimension_numbers<[1], [0], [0], [1], [0, 0, 1, 1], [], []>} : vector<8x32xbf16>, vector<32x128xbf16>, vector<8x128xf32> -> vector<8x128xf32>
    %c0_14 = arith.constant 0 : index
    %c0_15 = arith.constant 0 : index
    %15 = vector.load %arg8[%c0_14, %c0_15] : memref<1x128xf32, #tpu.memory_space<vmem>>, vector<1x128xf32>
    %16 = vector.broadcast %15 : vector<1x128xf32> to vector<8x128xf32>
    %17 = arith.addf %14, %16 : vector<8x128xf32>
    %c0_16 = arith.constant 0 : index
    %c0_17 = arith.constant 0 : index
    %18 = vector.load %arg15[%c0_16, %c0_17] : memref<8x128xf32, #tpu.memory_space<vmem>>, vector<8x128xf32>
    tpu.vector_store %arg15[%c0_16, %c0_17], %17 {strides = array<i32>} : memref<8x128xf32, #tpu.memory_space<vmem>>, vector<8x128xf32>,
    %19 = vector.extract_strided_slice %17 {offsets = [0, 0], sizes = [8, 8], strides = [1, 1]} : vector<8x128xf32> to vector<8x8xf32>
    %20 = vector.extract_strided_slice %17 {offsets = [0, 8], sizes = [8, 8], strides = [1, 1]} : vector<8x128xf32> to vector<8x8xf32>
    %cst_18 = arith.constant 5.000000e-01 : f32
    %21 = vector.broadcast %cst_18 : f32 to vector<8x8xf32>
    %22 = arith.mulf %20, %21 : vector<8x8xf32>
    %23 = math.exp %22 : vector<8x8xf32>
    %c0_19 = arith.constant 0 : index
    %c0_20 = arith.constant 0 : index
    %24 = vector.load %arg3[%c0_19, %c0_20] : memref<8x8xf32, #tpu.memory_space<vmem>>, vector<8x8xf32>
    %25 = arith.mulf %24, %23 : vector<8x8xf32>
    %26 = arith.addf %25, %19 : vector<8x8xf32>
    %27 = arith.truncf %26 : vector<8x8xf32> to vector<8x8xbf16>
    %c0_21 = arith.constant 0 : index
    %c0_22 = arith.constant 0 : index
    %28 = vector.load %arg9[%c0_21, %c0_22] : memref<8x32xbf16, #tpu.memory_space<vmem>>, vector<8x32xbf16>
    %cst_23 = arith.constant dense<0.000000e+00> : vector<8x32xf32>
    %29 = tpu.matmul %27, %28, %cst_23 {dimension_numbers = #tpu.dot_dimension_numbers<[1], [0], [0], [1], [0, 0, 1, 1], [], []>} : vector<8x8xbf16>, vector<8x32xbf16>, vector<8x32xf32> -> vector<8x32xf32>
    %c0_24 = arith.constant 0 : index
    %c0_25 = arith.constant 0 : index
    %30 = vector.load %arg10[%c0_24, %c0_25] : memref<10x32xbf16, #tpu.memory_space<vmem>>, vector<10x32xbf16>
    %cst_26 = arith.constant dense<0.000000e+00> : vector<8x32xf32>
    %31 = tpu.matmul %1, %30, %cst_26 {dimension_numbers = #tpu.dot_dimension_numbers<[1], [0], [0], [1], [0, 0, 1, 1], [], []>} : vector<8x10xbf16>, vector<10x32xbf16>, vector<8x32xf32> -> vector<8x32xf32>
    %32 = arith.addf %29, %31 : vector<8x32xf32>
    %c0_27 = arith.constant 0 : index
    %c0_28 = arith.constant 0 : index
    %33 = vector.load %arg11[%c0_27, %c0_28] : memref<1x32xf32, #tpu.memory_space<vmem>>, vector<1x32xf32>
    %34 = vector.broadcast %33 : vector<1x32xf32> to vector<8x32xf32>
    %35 = arith.addf %32, %34 : vector<8x32xf32>
    %cst_29 = arith.constant 0.000000e+00 : f32
    %36 = vector.broadcast %cst_29 : f32 to vector<8x32xf32>
    %37 = arith.maximumf %35, %36 : vector<8x32xf32>
    %38 = arith.truncf %37 : vector<8x32xf32> to vector<8x32xbf16>
    %c0_30 = arith.constant 0 : index
    %c0_31 = arith.constant 0 : index
    %39 = vector.load %arg12[%c0_30, %c0_31] : memref<32x896xbf16, #tpu.memory_space<vmem>>, vector<32x896xbf16>
    %cst_32 = arith.constant dense<0.000000e+00> : vector<8x896xf32>
    %40 = tpu.matmul %38, %39, %cst_32 {dimension_numbers = #tpu.dot_dimension_numbers<[1], [0], [0], [1], [0, 0, 1, 1], [], []>} : vector<8x32xbf16>, vector<32x896xbf16>, vector<8x896xf32> -> vector<8x896xf32>
    %c0_33 = arith.constant 0 : index
    %c0_34 = arith.constant 0 : index
    %41 = vector.load %arg13[%c0_33, %c0_34] : memref<1x896xf32, #tpu.memory_space<vmem>>, vector<1x896xf32>
    %42 = vector.broadcast %41 : vector<1x896xf32> to vector<8x896xf32>
    %43 = arith.addf %40, %42 : vector<8x896xf32>
    %cst_35 = arith.constant 5.000000e-01 : f32
    %44 = vector.broadcast %cst_35 : f32 to vector<8x896xf32>
    %45 = arith.mulf %44, %43 : vector<8x896xf32>
    %46 = math.tanh %45 : vector<8x896xf32>
    %cst_36 = arith.constant 5.000000e-01 : f32
    %47 = vector.broadcast %cst_36 : f32 to vector<8x896xf32>
    %48 = arith.mulf %47, %46 : vector<8x896xf32>
    %cst_37 = arith.constant 5.000000e-01 : f32
    %49 = vector.broadcast %cst_37 : f32 to vector<8x896xf32>
    %50 = arith.addf %48, %49 : vector<8x896xf32>
    %51 = arith.truncf %50 : vector<8x896xf32> to vector<8x896xbf16>
    %c0_38 = arith.constant 0 : index
    %c0_39 = arith.constant 0 : index
    %52 = vector.load %arg14[%c0_38, %c0_39] : memref<8x896xbf16, #tpu.memory_space<vmem>>, vector<8x896xbf16>
    tpu.vector_store %arg14[%c0_38, %c0_39], %51 {strides = array<i32>} : memref<8x896xbf16, #tpu.memory_space<vmem>>, vector<8x896xbf16>,
    return
  }
  func.func @transform_0(%arg0: i32) -> (i32, i32) {
    %c0_i32 = arith.constant 0 : i32
    %c0_i32_0 = arith.constant 0 : i32
    return %arg0, %c0_i32 : i32, i32
  }
  func.func @transform_1(%arg0: i32) -> (i32, i32) {
    %c0_i32 = arith.constant 0 : i32
    %c0_i32_0 = arith.constant 0 : i32
    return %arg0, %c0_i32 : i32, i32
  }
  func.func @transform_2(%arg0: i32) -> (i32, i32) {
    %c0_i32 = arith.constant 0 : i32
    %c0_i32_0 = arith.constant 0 : i32
    return %arg0, %c0_i32 : i32, i32
  }
  func.func @transform_3(%arg0: i32) -> (i32, i32) {
    %c0_i32 = arith.constant 0 : i32
    %c0_i32_0 = arith.constant 0 : i32
    %c0_i32_1 = arith.constant 0 : i32
    return %c0_i32, %c0_i32_0 : i32, i32
  }
  func.func @transform_4(%arg0: i32) -> (i32, i32) {
    %c0_i32 = arith.constant 0 : i32
    %c0_i32_0 = arith.constant 0 : i32
    %c0_i32_1 = arith.constant 0 : i32
    return %c0_i32, %c0_i32_0 : i32, i32
  }
  func.func @transform_5(%arg0: i32) -> (i32, i32) {
    %c0_i32 = arith.constant 0 : i32
    %c0_i32_0 = arith.constant 0 : i32
    %c0_i32_1 = arith.constant 0 : i32
    return %c0_i32, %c0_i32_0 : i32, i32
  }
  func.func @transform_6(%arg0: i32) -> (i32, i32) {
    %c0_i32 = arith.constant 0 : i32
    %c0_i32_0 = arith.constant 0 : i32
    %c0_i32_1 = arith.constant 0 : i32
    return %c0_i32, %c0_i32_0 : i32, i32
  }
  func.func @transform_7(%arg0: i32) -> (i32, i32) {
    %c0_i32 = arith.constant 0 : i32
    %c0_i32_0 = arith.constant 0 : i32
    %c0_i32_1 = arith.constant 0 : i32
    return %c0_i32, %c0_i32_0 : i32, i32
  }
  func.func @transform_8(%arg0: i32) -> (i32, i32) {
    %c0_i32 = arith.constant 0 : i32
    %c0_i32_0 = arith.constant 0 : i32
    %c0_i32_1 = arith.constant 0 : i32
    return %c0_i32, %c0_i32_0 : i32, i32
  }
  func.func @transform_9(%arg0: i32) -> (i32, i32) {
    %c0_i32 = arith.constant 0 : i32
    %c0_i32_0 = arith.constant 0 : i32
    %c0_i32_1 = arith.constant 0 : i32
    return %c0_i32, %c0_i32_0 : i32, i32
  }
  func.func @transform_10(%arg0: i32) -> (i32, i32) {
    %c0_i32 = arith.constant 0 : i32
    %c0_i32_0 = arith.constant 0 : i32
    %c0_i32_1 = arith.constant 0 : i32
    return %c0_i32, %c0_i32_0 : i32, i32
  }
  func.func @transform_11(%arg0: i32) -> (i32, i32) {
    %c0_i32 = arith.constant 0 : i32
    %c0_i32_0 = arith.constant 0 : i32
    %c0_i32_1 = arith.constant 0 : i32
    return %c0_i32, %c0_i32_0 : i32, i32
  }
  func.func @transform_12(%arg0: i32) -> (i32, i32) {
    %c0_i32 = arith.constant 0 : i32
    %c0_i32_0 = arith.constant 0 : i32
    %c0_i32_1 = arith.constant 0 : i32
    return %c0_i32, %c0_i32_0 : i32, i32
  }
  func.func @transform_13(%arg0: i32) -> (i32, i32) {
    %c0_i32 = arith.constant 0 : i32
    %c0_i32_0 = arith.constant 0 : i32
    return %arg0, %c0_i32 : i32, i32
  }
  func.func @transform_14(%arg0: i32) -> (i32, i32) {
    %c0_i32 = arith.constant 0 : i32
    %c0_i32_0 = arith.constant 0 : i32
    return %arg0, %c0_i32 : i32, i32
  }
}

</mosaic_0001>

<llo_original>
// kernel: tpu_custom_call.1
$region0: #{tpu_custom_call.1}
  #allocation0 [shape = 'u32[]', space=smem, size = 0x4, offset = 0x4, fixed_abs, tag = 'smem constant byte address 0x4 - core index']
  #allocation1 [shape = 'u32[144,128]{1,0:T(1,128)}', space=vmem, size = 0x12000, scoped, tag = 'internal scratch']
  %s0 = inlined_call_operand.vmem [shape: bf16[8,896], index: 0, kind: input, shape index: {}]
  %s1 = inlined_call_operand.vmem [shape: bf16[8,10], index: 1, kind: input, shape index: {}]
  %s2 = inlined_call_operand.vmem [shape: f32[8,8], index: 2, kind: input, shape index: {}]
  %s3 = inlined_call_operand.vmem [shape: bf16[896,32], index: 3, kind: input, shape index: {}]
  %s4 = inlined_call_operand.vmem [shape: bf16[10,32], index: 4, kind: input, shape index: {}]
  %s5 = inlined_call_operand.vmem [shape: f32[1,32], index: 5, kind: input, shape index: {}]
  %s6 = inlined_call_operand.vmem [shape: bf16[32,128], index: 6, kind: input, shape index: {}]
  %s7 = inlined_call_operand.vmem [shape: f32[1,128], index: 7, kind: input, shape index: {}]
  %s8 = inlined_call_operand.vmem [shape: bf16[8,32], index: 8, kind: input, shape index: {}]
  %s9 = inlined_call_operand.vmem [shape: bf16[10,32], index: 9, kind: input, shape index: {}]
  %s10 = inlined_call_operand.vmem [shape: f32[1,32], index: 10, kind: input, shape index: {}]
  %s11 = inlined_call_operand.vmem [shape: bf16[32,896], index: 11, kind: input, shape index: {}]
  %s12 = inlined_call_operand.vmem [shape: f32[1,896], index: 12, kind: input, shape index: {}]
  %s13 = inlined_call_operand.hbm [shape: bf16[8,896], index: 13, kind: output, shape index: {0}]
  %s14 = inlined_call_operand.hbm [shape: f32[8,128], index: 14, kind: output, shape index: {1}]
  %15 = xla_tuple %s13, %s14
  %s16 = sld [smem:[#allocation0]]
  $region70: #{tpu_custom_call.1} parent=0
    _
  %s18 = ssub.s32 1, %s16
  %s19 = scalar_select 0, %s18, %s16
  $region1: #{tpu_custom_call.1} parent=0
    #allocation2 [shape = 'u8[14336]{0}', space=vmem, size = 0x3800, scoped, tag = 'output window, operand 0, single buffered']
    #allocation3 [shape = 's32[1]{0}', space=sflag, size = 0x4, scoped, tag = 'scoped memory for tpu_custom_call.1']
    #allocation4 [shape = 'u8[4096]{0}', space=vmem, size = 0x1000, scoped, tag = 'output window, operand 1, single buffered']
    #allocation5 [shape = 's32[1]{0}', space=sflag, size = 0x4, scoped, tag = 'scoped memory for tpu_custom_call.1']
    %20 = vsyncpa [#allocation3], 0
    %21 = vsyncpa [#allocation5], 0
    // Predicated region
    $region2: #{tpu_custom_call.1} parent=1 // pred_check
      _
    $region3: #{tpu_custom_call.1} parent=1 // pred_check_branch
      %23 = sbr.rel (0) target = $region5
    $region4: #{tpu_custom_call.1} parent=1 // pred_region
      _
    $region5: #{tpu_custom_call.1} parent=1 // pred_fallthru
      _
    // Predicated region
    $region6: #{tpu_custom_call.1} parent=1 // pred_check
      _
    $region7: #{tpu_custom_call.1} parent=1 // pred_check_branch
      %25 = sbr.rel (0) target = $region9
    $region8: #{tpu_custom_call.1} parent=1 // pred_region
      _
    $region9: #{tpu_custom_call.1} parent=1 // pred_fallthru
      _
    // Predicated region
    $region10: #{tpu_custom_call.1} parent=1 // pred_check
      _
    $region11: #{tpu_custom_call.1} parent=1 // pred_check_branch
      %27 = sbr.rel (0) target = $region13
    $region12: #{tpu_custom_call.1} parent=1 // pred_region
      _
    $region13: #{tpu_custom_call.1} parent=1 // pred_fallthru
      _
    // Predicated region
    $region14: #{tpu_custom_call.1} parent=1 // pred_check
      _
    $region15: #{tpu_custom_call.1} parent=1 // pred_check_branch
      %29 = sbr.rel (0) target = $region17
    $region16: #{tpu_custom_call.1} parent=1 // pred_region
      _
    $region17: #{tpu_custom_call.1} parent=1 // pred_fallthru
      _
    // Predicated region
    $region18: #{tpu_custom_call.1} parent=1 // pred_check
      _
    $region19: #{tpu_custom_call.1} parent=1 // pred_check_branch
      %31 = sbr.rel (0) target = $region21
    $region20: #{tpu_custom_call.1} parent=1 // pred_region
      _
    $region21: #{tpu_custom_call.1} parent=1 // pred_fallthru
      _
    // Predicated region
    $region22: #{tpu_custom_call.1} parent=1 // pred_check
      _
    $region23: #{tpu_custom_call.1} parent=1 // pred_check_branch
      %33 = sbr.rel (0) target = $region25
    $region24: #{tpu_custom_call.1} parent=1 // pred_region
      _
    $region25: #{tpu_custom_call.1} parent=1 // pred_fallthru
      _
    // Predicated region
    $region26: #{tpu_custom_call.1} parent=1 // pred_check
      _
    $region27: #{tpu_custom_call.1} parent=1 // pred_check_branch
      %35 = sbr.rel (0) target = $region29
    $region28: #{tpu_custom_call.1} parent=1 // pred_region
      _
    $region29: #{tpu_custom_call.1} parent=1 // pred_fallthru
      _
    // Predicated region
    $region30: #{tpu_custom_call.1} parent=1 // pred_check
      _
    $region31: #{tpu_custom_call.1} parent=1 // pred_check_branch
      %37 = sbr.rel (0) target = $region33
    $region32: #{tpu_custom_call.1} parent=1 // pred_region
      _
    $region33: #{tpu_custom_call.1} parent=1 // pred_fallthru
      _
    // Predicated region
    $region34: #{tpu_custom_call.1} parent=1 // pred_check
      _
    $region35: #{tpu_custom_call.1} parent=1 // pred_check_branch
      %39 = sbr.rel (0) target = $region37
    $region36: #{tpu_custom_call.1} parent=1 // pred_region
      _
    $region37: #{tpu_custom_call.1} parent=1 // pred_fallthru
      _
    // Predicated region
    $region38: #{tpu_custom_call.1} parent=1 // pred_check
      _
    $region39: #{tpu_custom_call.1} parent=1 // pred_check_branch
      %41 = sbr.rel (0) target = $region41
    $region40: #{tpu_custom_call.1} parent=1 // pred_region
      _
    $region41: #{tpu_custom_call.1} parent=1 // pred_fallthru
      _
    // Predicated region
    $region42: #{tpu_custom_call.1} parent=1 // pred_check
      _
    $region43: #{tpu_custom_call.1} parent=1 // pred_check_branch
      %43 = sbr.rel (0) target = $region45
    $region44: #{tpu_custom_call.1} parent=1 // pred_region
      _
    $region45: #{tpu_custom_call.1} parent=1 // pred_fallthru
      _
    // Predicated region
    $region46: #{tpu_custom_call.1} parent=1 // pred_check
      _
    $region47: #{tpu_custom_call.1} parent=1 // pred_check_branch
      %45 = sbr.rel (0) target = $region49
    $region48: #{tpu_custom_call.1} parent=1 // pred_region
      _
    $region49: #{tpu_custom_call.1} parent=1 // pred_fallthru
      _
    // Predicated region
    $region50: #{tpu_custom_call.1} parent=1 // pred_check
      _
    $region51: #{tpu_custom_call.1} parent=1 // pred_check_branch
      %47 = sbr.rel (0) target = $region53
    $region52: #{tpu_custom_call.1} parent=1 // pred_region
      _
    $region53: #{tpu_custom_call.1} parent=1 // pred_fallthru
      _
    %v49 = vld [vmem:[%s0] sm:$0xff]
    %v50 = vld [vmem:[%s0 + $0x8] sm:$0xff]
    %v51 = vld [vmem:[%s0 + $0x10] sm:$0xff]
    %v52 = vld [vmem:[%s0 + $0x18] sm:$0xf]
    %v53 = vld [vmem:[%s1] sm:$0xf]
    %v54 = vld [vmem:[%s3] sm:$0xf]
    %v55 = vld [vmem:[%s3 + $0x4] sm:$0xf]
    %v56 = vld [vmem:[%s3 + $0x8] sm:$0xf]
    %v57 = vld [vmem:[%s3 + $0xc] sm:$0xf]
    %v58 = vld [vmem:[%s3 + $0x10] sm:$0xf]
    %v59 = vld [vmem:[%s3 + $0x14] sm:$0xf]
    %v60 = vld [vmem:[%s3 + $0x18] sm:$0xf]
    %v61 = vld [vmem:[%s3 + $0x1c] sm:$0xf]
    %v62 = vld [vmem:[%s3 + $0x20] sm:$0xf]
    %v63 = vld [vmem:[%s3 + $0x24] sm:$0xf]
    %v64 = vld [vmem:[%s3 + $0x28] sm:$0xf]
    %v65 = vld [vmem:[%s3 + $0x2c] sm:$0xf]
    %v66 = vld [vmem:[%s3 + $0x30] sm:$0xf]
    %v67 = vld [vmem:[%s3 + $0x34] sm:$0xf]
    %v68 = vld [vmem:[%s3 + $0x38] sm:$0xf]
    %v69 = vld [vmem:[%s3 + $0x3c] sm:$0xf]
    %v70 = vld [vmem:[%s3 + $0x40] sm:$0xf]
    %v71 = vld [vmem:[%s3 + $0x44] sm:$0xf]
    %v72 = vld [vmem:[%s3 + $0x48] sm:$0xf]
    %v73 = vld [vmem:[%s3 + $0x4c] sm:$0xf]
    %v74 = vld [vmem:[%s3 + $0x50] sm:$0xf]
    %v75 = vld [vmem:[%s3 + $0x54] sm:$0xf]
    %v76 = vld [vmem:[%s3 + $0x58] sm:$0xf]
    %v77 = vld [vmem:[%s3 + $0x5c] sm:$0xf]
    %v78 = vld [vmem:[%s3 + $0x60] sm:$0xf]
    %v79 = vld [vmem:[%s3 + $0x64] sm:$0xf]
    %v80 = vld [vmem:[%s3 + $0x68] sm:$0xf]
    %v81 = vld [vmem:[%s3 + $0x6c] sm:$0xf]
    %v82 = vld [vmem:[%s3 + $0x70] sm:$0xf]
    %v83 = vld [vmem:[%s3 + $0x74] sm:$0xf]
    %v84 = vld [vmem:[%s3 + $0x78] sm:$0xf]
    %v85 = vld [vmem:[%s3 + $0x7c] sm:$0xf]
    %v86 = vld [vmem:[%s3 + $0x80] sm:$0xf]
    %v87 = vld [vmem:[%s3 + $0x84] sm:$0xf]
    %v88 = vld [vmem:[%s3 + $0x88] sm:$0xf]
    %v89 = vld [vmem:[%s3 + $0x8c] sm:$0xf]
    %v90 = vld [vmem:[%s3 + $0x90] sm:$0xf]
    %v91 = vld [vmem:[%s3 + $0x94] sm:$0xf]
    %v92 = vld [vmem:[%s3 + $0x98] sm:$0xf]
    %v93 = vld [vmem:[%s3 + $0x9c] sm:$0xf]
    %v94 = vld [vmem:[%s3 + $0xa0] sm:$0xf]
    %v95 = vld [vmem:[%s3 + $0xa4] sm:$0xf]
    %v96 = vld [vmem:[%s3 + $0xa8] sm:$0xf]
    %v97 = vld [vmem:[%s3 + $0xac] sm:$0xf]
    %v98 = vld [vmem:[%s3 + $0xb0] sm:$0xf]
    %v99 = vld [vmem:[%s3 + $0xb4] sm:$0xf]
    %v100 = vld [vmem:[%s3 + $0xb8] sm:$0xf]
    %v101 = vld [vmem:[%s3 + $0xbc] sm:$0xf]
    %v102 = vld [vmem:[%s3 + $0xc0] sm:$0xf]
    %v103 = vld [vmem:[%s3 + $0xc4] sm:$0xf]
    %v104 = vld [vmem:[%s3 + $0xc8] sm:$0xf]
    %v105 = vld [vmem:[%s3 + $0xcc] sm:$0xf]
    %v106 = vld [vmem:[%s3 + $0xd0] sm:$0xf]
    %v107 = vld [vmem:[%s3 + $0xd4] sm:$0xf]
    %v108 = vld [vmem:[%s3 + $0xd8] sm:$0xf]
    %v109 = vld [vmem:[%s3 + $0xdc] sm:$0xf]
    %v110 = vld [vmem:[%s3 + $0xe0] sm:$0xf]
    %v111 = vld [vmem:[%s3 + $0xe4] sm:$0xf]
    %v112 = vld [vmem:[%s3 + $0xe8] sm:$0xf]
    %v113 = vld [vmem:[%s3 + $0xec] sm:$0xf]
    %v114 = vld [vmem:[%s3 + $0xf0] sm:$0xf]
    %v115 = vld [vmem:[%s3 + $0xf4] sm:$0xf]
    %v116 = vld [vmem:[%s3 + $0xf8] sm:$0xf]
    %v117 = vld [vmem:[%s3 + $0xfc] sm:$0xf]
    %v118 = vld [vmem:[%s3 + $0x100] sm:$0xf]
    %v119 = vld [vmem:[%s3 + $0x104] sm:$0xf]
    %v120 = vld [vmem:[%s3 + $0x108] sm:$0xf]
    %v121 = vld [vmem:[%s3 + $0x10c] sm:$0xf]
    %v122 = vld [vmem:[%s3 + $0x110] sm:$0xf]
    %v123 = vld [vmem:[%s3 + $0x114] sm:$0xf]
    %v124 = vld [vmem:[%s3 + $0x118] sm:$0xf]
    %v125 = vld [vmem:[%s3 + $0x11c] sm:$0xf]
    %v126 = vld [vmem:[%s3 + $0x120] sm:$0xf]
    %v127 = vld [vmem:[%s3 + $0x124] sm:$0xf]
    %v128 = vld [vmem:[%s3 + $0x128] sm:$0xf]
    %v129 = vld [vmem:[%s3 + $0x12c] sm:$0xf]
    %v130 = vld [vmem:[%s3 + $0x130] sm:$0xf]
    %v131 = vld [vmem:[%s3 + $0x134] sm:$0xf]
    %v132 = vld [vmem:[%s3 + $0x138] sm:$0xf]
    %v133 = vld [vmem:[%s3 + $0x13c] sm:$0xf]
    %v134 = vld [vmem:[%s3 + $0x140] sm:$0xf]
    %v135 = vld [vmem:[%s3 + $0x144] sm:$0xf]
    %v136 = vld [vmem:[%s3 + $0x148] sm:$0xf]
    %v137 = vld [vmem:[%s3 + $0x14c] sm:$0xf]
    %v138 = vld [vmem:[%s3 + $0x150] sm:$0xf]
    %v139 = vld [vmem:[%s3 + $0x154] sm:$0xf]
    %v140 = vld [vmem:[%s3 + $0x158] sm:$0xf]
    %v141 = vld [vmem:[%s3 + $0x15c] sm:$0xf]
    %v142 = vld [vmem:[%s3 + $0x160] sm:$0xf]
    %v143 = vld [vmem:[%s3 + $0x164] sm:$0xf]
    %v144 = vld [vmem:[%s3 + $0x168] sm:$0xf]
    %v145 = vld [vmem:[%s3 + $0x16c] sm:$0xf]
    %v146 = vld [vmem:[%s3 + $0x170] sm:$0xf]
    %v147 = vld [vmem:[%s3 + $0x174] sm:$0xf]
    %v148 = vld [vmem:[%s3 + $0x178] sm:$0xf]
    %v149 = vld [vmem:[%s3 + $0x17c] sm:$0xf]
    %v150 = vld [vmem:[%s3 + $0x180] sm:$0xf]
    %v151 = vld [vmem:[%s3 + $0x184] sm:$0xf]
    %v152 = vld [vmem:[%s3 + $0x188] sm:$0xf]
    %v153 = vld [vmem:[%s3 + $0x18c] sm:$0xf]
    %v154 = vld [vmem:[%s3 + $0x190] sm:$0xf]
    %v155 = vld [vmem:[%s3 + $0x194] sm:$0xf]
    %v156 = vld [vmem:[%s3 + $0x198] sm:$0xf]
    %v157 = vld [vmem:[%s3 + $0x19c] sm:$0xf]
    %v158 = vld [vmem:[%s3 + $0x1a0] sm:$0xf]
    %v159 = vld [vmem:[%s3 + $0x1a4] sm:$0xf]
    %v160 = vld [vmem:[%s3 + $0x1a8] sm:$0xf]
    %v161 = vld [vmem:[%s3 + $0x1ac] sm:$0xf]
    %v162 = vld [vmem:[%s3 + $0x1b0] sm:$0xf]
    %v163 = vld [vmem:[%s3 + $0x1b4] sm:$0xf]
    %v164 = vld [vmem:[%s3 + $0x1b8] sm:$0xf]
    %v165 = vld [vmem:[%s3 + $0x1bc] sm:$0xf]
    %v166 = vld [vmem:[%s4] sm:$0xf]
    %v167 = vld [vmem:[%s4 + $0x4] sm:$0x1]
    %v170 = vunpack.c.l.b16 %v166
    %v171 = vunpack.c.l.b16 %v167
    %v172 = vpack.c.b16 %v171, %v170
    %vm173 = vcmask 80896
    %v175 = vsel %vm173, %v53, 0
    %vm177 = vcmask 1044480
    %v179 = vsel %vm177, %v172, 0
    %181 = vmatprep.subr.bf16.mxu0 0
    %182 = vmatpush1.bf16.msra.mxu0 %v179
    %183 = vmatprep.subr.bf16.mxu0 0
    %184 = vmatpush1.bf16.msra.mxu0 0
    %185 = vmatprep.subr.bf16.mxu0 0
    %186 = vmatpush1.bf16.msra.mxu0 0
    %187 = vmatprep.subr.bf16.mxu0 0
    %188 = vmatpush1.bf16.msra.mxu0 0
    %189 = vmatprep.subr.bf16.mxu0 0
    %190 = vmatpush1.bf16.msra.mxu0 0
    %191 = vmatprep.subr.bf16.mxu0 0
    %192 = vmatpush1.bf16.msra.mxu0 0
    %193 = vmatprep.subr.bf16.mxu0 0
    %194 = vmatpush1.bf16.msra.mxu0 0
    %195 = vmatprep.subr.bf16.mxu0 0
    %196 = vmatpush1.bf16.msra.mxu0 0
    %197 = vmatprep.subr.bf16.mxu0 0
    %198 = vmatpush1.bf16.msra.mxu0 0
    %199 = vmatprep.subr.bf16.mxu0 0
    %200 = vmatpush1.bf16.msra.mxu0 0
    %201 = vmatprep.subr.bf16.mxu0 0
    %202 = vmatpush1.bf16.msra.mxu0 0
    %203 = vmatprep.subr.bf16.mxu0 0
    %204 = vmatpush1.bf16.msra.mxu0 0
    %205 = vmatprep.subr.bf16.mxu0 0
    %206 = vmatpush1.bf16.msra.mxu0 0
    %207 = vmatprep.subr.bf16.mxu0 0
    %208 = vmatpush1.bf16.msra.mxu0 0
    %209 = vmatprep.subr.bf16.mxu0 0
    %210 = vmatpush1.bf16.msra.mxu0 0
    %211 = vmatprep.subr.bf16.mxu0 0
    %212 = vmatpush1.bf16.msra.mxu0 0
    %213 = vmatprep.mubr.bf16.mxu0 0
    %214 = vmatmul.mubr.bf16.gmra.mrb[0].mxu0 %v175
    %v215 = vpop.f32.mrb[0].mxu0
    %v216 = vadd.f32 0.0, %v215
    %v217 = vpop.f32.mrb[0].mxu0
    %v218 = vpop.f32.mrb[0].mxu0
    %v219 = vpop.f32.mrb[0].mxu0
    %220 = vdwg.mxu0
    %v225 = vunpack.c.l.b16 %v49
    %v226 = vunpack.c.h.b16 %v49
    %v227 = vunpack.c.l.b16 %v50
    %v228 = vunpack.c.h.b16 %v50
    %v229 = vunpack.c.l.b16 %v51
    %v230 = vunpack.c.h.b16 %v51
    %v231 = vunpack.c.l.b16 %v52
    %v232 = vpack.c.b16 %v225, %v225
    %v233 = vpack.c.b16 %v226, %v226
    %v234 = vpack.c.b16 %v227, %v227
    %v235 = vpack.c.b16 %v228, %v228
    %v236 = vpack.c.b16 %v229, %v229
    %v237 = vpack.c.b16 %v230, %v230
    %v238 = vpack.c.b16 %v231, %v231
    %v358 = vunpack.c.l.b16 %v54
    %v359 = vunpack.c.l.b16 %v55
    %v360 = vunpack.c.l.b16 %v56
    %v361 = vunpack.c.l.b16 %v57
    %v362 = vunpack.c.l.b16 %v58
    %v363 = vunpack.c.l.b16 %v59
    %v364 = vunpack.c.l.b16 %v60
    %v365 = vunpack.c.l.b16 %v61
    %v366 = vunpack.c.l.b16 %v62
    %v367 = vunpack.c.l.b16 %v63
    %v368 = vunpack.c.l.b16 %v64
    %v369 = vunpack.c.l.b16 %v65
    %v370 = vunpack.c.l.b16 %v66
    %v371 = vunpack.c.l.b16 %v67
    %v372 = vunpack.c.l.b16 %v68
    %v373 = vunpack.c.l.b16 %v69
    %v374 = vunpack.c.l.b16 %v70
    %v375 = vunpack.c.l.b16 %v71
    %v376 = vunpack.c.l.b16 %v72
    %v377 = vunpack.c.l.b16 %v73
    %v378 = vunpack.c.l.b16 %v74
    %v379 = vunpack.c.l.b16 %v75
    %v380 = vunpack.c.l.b16 %v76
    %v381 = vunpack.c.l.b16 %v77
    %v382 = vunpack.c.l.b16 %v78
    %v383 = vunpack.c.l.b16 %v79
    %v384 = vunpack.c.l.b16 %v80
    %v385 = vunpack.c.l.b16 %v81
    %v386 = vunpack.c.l.b16 %v82
    %v387 = vunpack.c.l.b16 %v83
    %v388 = vunpack.c.l.b16 %v84
    %v389 = vunpack.c.l.b16 %v85
    %v390 = vunpack.c.l.b16 %v86
    %v391 = vunpack.c.l.b16 %v87
    %v392 = vunpack.c.l.b16 %v88
    %v393 = vunpack.c.l.b16 %v89
    %v394 = vunpack.c.l.b16 %v90
    %v395 = vunpack.c.l.b16 %v91
    %v396 = vunpack.c.l.b16 %v92
    %v397 = vunpack.c.l.b16 %v93
    %v398 = vunpack.c.l.b16 %v94
    %v399 = vunpack.c.l.b16 %v95
    %v400 = vunpack.c.l.b16 %v96
    %v401 = vunpack.c.l.b16 %v97
    %v402 = vunpack.c.l.b16 %v98
    %v403 = vunpack.c.l.b16 %v99
    %v404 = vunpack.c.l.b16 %v100
    %v405 = vunpack.c.l.b16 %v101
    %v406 = vunpack.c.l.b16 %v102
    %v407 = vunpack.c.l.b16 %v103
    %v408 = vunpack.c.l.b16 %v104
    %v409 = vunpack.c.l.b16 %v105
    %v410 = vunpack.c.l.b16 %v106
    %v411 = vunpack.c.l.b16 %v107
    %v412 = vunpack.c.l.b16 %v108
    %v413 = vunpack.c.l.b16 %v109
    %v414 = vunpack.c.l.b16 %v110
    %v415 = vunpack.c.l.b16 %v111
    %v416 = vunpack.c.l.b16 %v112
    %v417 = vunpack.c.l.b16 %v113
    %v418 = vunpack.c.l.b16 %v114
    %v419 = vunpack.c.l.b16 %v115
    %v420 = vunpack.c.l.b16 %v116
    %v421 = vunpack.c.l.b16 %v117
    %v422 = vunpack.c.l.b16 %v118
    %v423 = vunpack.c.l.b16 %v119
    %v424 = vunpack.c.l.b16 %v120
    %v425 = vunpack.c.l.b16 %v121
    %v426 = vunpack.c.l.b16 %v122
    %v427 = vunpack.c.l.b16 %v123
    %v428 = vunpack.c.l.b16 %v124
    %v429 = vunpack.c.l.b16 %v125
    %v430 = vunpack.c.l.b16 %v126
    %v431 = vunpack.c.l.b16 %v127
    %v432 = vunpack.c.l.b16 %v128
    %v433 = vunpack.c.l.b16 %v129
    %v434 = vunpack.c.l.b16 %v130
    %v435 = vunpack.c.l.b16 %v131
    %v436 = vunpack.c.l.b16 %v132
    %v437 = vunpack.c.l.b16 %v133
    %v438 = vunpack.c.l.b16 %v134
    %v439 = vunpack.c.l.b16 %v135
    %v440 = vunpack.c.l.b16 %v136
    %v441 = vunpack.c.l.b16 %v137
    %v442 = vunpack.c.l.b16 %v138
    %v443 = vunpack.c.l.b16 %v139
    %v444 = vunpack.c.l.b16 %v140
    %v445 = vunpack.c.l.b16 %v141
    %v446 = vunpack.c.l.b16 %v142
    %v447 = vunpack.c.l.b16 %v143
    %v448 = vunpack.c.l.b16 %v144
    %v449 = vunpack.c.l.b16 %v145
    %v450 = vunpack.c.l.b16 %v146
    %v451 = vunpack.c.l.b16 %v147
    %v452 = vunpack.c.l.b16 %v148
    %v453 = vunpack.c.l.b16 %v149
    %v454 = vunpack.c.l.b16 %v150
    %v455 = vunpack.c.l.b16 %v151
    %v456 = vunpack.c.l.b16 %v152
    %v457 = vunpack.c.l.b16 %v153
    %v458 = vunpack.c.l.b16 %v154
    %v459 = vunpack.c.l.b16 %v155
    %v460 = vunpack.c.l.b16 %v156
    %v461 = vunpack.c.l.b16 %v157
    %v462 = vunpack.c.l.b16 %v158
    %v463 = vunpack.c.l.b16 %v159
    %v464 = vunpack.c.l.b16 %v160
    %v465 = vunpack.c.l.b16 %v161
    %v466 = vunpack.c.l.b16 %v162
    %v467 = vunpack.c.l.b16 %v163
    %v468 = vunpack.c.l.b16 %v164
    %v469 = vunpack.c.l.b16 %v165
    %v470 = vpack.c.b16 %v359, %v358
    %v471 = vpack.c.b16 %v361, %v360
    %v472 = vpack.c.b16 %v363, %v362
    %v473 = vpack.c.b16 %v365, %v364
    %v474 = vpack.c.b16 %v367, %v366
    %v475 = vpack.c.b16 %v369, %v368
    %v476 = vpack.c.b16 %v371, %v370
    %v477 = vpack.c.b16 %v373, %v372
    %v478 = vpack.c.b16 %v375, %v374
    %v479 = vpack.c.b16 %v377, %v376
    %v480 = vpack.c.b16 %v379, %v378
    %v481 = vpack.c.b16 %v381, %v380
    %v482 = vpack.c.b16 %v383, %v382
    %v483 = vpack.c.b16 %v385, %v384
    %v484 = vpack.c.b16 %v387, %v386
    %v485 = vpack.c.b16 %v389, %v388
    %v486 = vpack.c.b16 %v391, %v390
    %v487 = vpack.c.b16 %v393, %v392
    %v488 = vpack.c.b16 %v395, %v394
    %v489 = vpack.c.b16 %v397, %v396
    %v490 = vpack.c.b16 %v399, %v398
    %v491 = vpack.c.b16 %v401, %v400
    %v492 = vpack.c.b16 %v403, %v402
    %v493 = vpack.c.b16 %v405, %v404
    %v494 = vpack.c.b16 %v407, %v406
    %v495 = vpack.c.b16 %v409, %v408
    %v496 = vpack.c.b16 %v411, %v410
    %v497 = vpack.c.b16 %v413, %v412
    %v498 = vpack.c.b16 %v415, %v414
    %v499 = vpack.c.b16 %v417, %v416
    %v500 = vpack.c.b16 %v419, %v418
    %v501 = vpack.c.b16 %v421, %v420
    %v502 = vpack.c.b16 %v423, %v422
    %v503 = vpack.c.b16 %v425, %v424
    %v504 = vpack.c.b16 %v427, %v426
    %v505 = vpack.c.b16 %v429, %v428
    %v506 = vpack.c.b16 %v431, %v430
    %v507 = vpack.c.b16 %v433, %v432
    %v508 = vpack.c.b16 %v435, %v434
    %v509 = vpack.c.b16 %v437, %v436
    %v510 = vpack.c.b16 %v439, %v438
    %v511 = vpack.c.b16 %v441, %v440
    %v512 = vpack.c.b16 %v443, %v442
    %v513 = vpack.c.b16 %v445, %v444
    %v514 = vpack.c.b16 %v447, %v446
    %v515 = vpack.c.b16 %v449, %v448
    %v516 = vpack.c.b16 %v451, %v450
    %v517 = vpack.c.b16 %v453, %v452
    %v518 = vpack.c.b16 %v455, %v454
    %v519 = vpack.c.b16 %v457, %v456
    %v520 = vpack.c.b16 %v459, %v458
    %v521 = vpack.c.b16 %v461, %v460
    %v522 = vpack.c.b16 %v463, %v462
    %v523 = vpack.c.b16 %v465, %v464
    %v524 = vpack.c.b16 %v467, %v466
    %v525 = vpack.c.b16 %v469, %v468
    %582 = vmatprep.subr.bf16.mxu0 0
    %583 = vmatpush1.bf16.msra.mxu0 %v470
    %584 = vmatprep.subr.bf16.mxu0 0
    %585 = vmatpush1.bf16.msra.mxu0 %v471
    %586 = vmatprep.subr.bf16.mxu0 0
    %587 = vmatpush1.bf16.msra.mxu0 %v472
    %588 = vmatprep.subr.bf16.mxu0 0
    %589 = vmatpush1.bf16.msra.mxu0 %v473
    %590 = vmatprep.subr.bf16.mxu0 0
    %591 = vmatpush1.bf16.msra.mxu0 %v474
    %592 = vmatprep.subr.bf16.mxu0 0
    %593 = vmatpush1.bf16.msra.mxu0 %v475
    %594 = vmatprep.subr.bf16.mxu0 0
    %595 = vmatpush1.bf16.msra.mxu0 %v476
    %596 = vmatprep.subr.bf16.mxu0 0
    %597 = vmatpush1.bf16.msra.mxu0 %v477
    %598 = vmatprep.subr.bf16.mxu0 0
    %599 = vmatpush1.bf16.msra.mxu0 %v478
    %600 = vmatprep.subr.bf16.mxu0 0
    %601 = vmatpush1.bf16.msra.mxu0 %v479
    %602 = vmatprep.subr.bf16.mxu0 0
    %603 = vmatpush1.bf16.msra.mxu0 %v480
    %604 = vmatprep.subr.bf16.mxu0 0
    %605 = vmatpush1.bf16.msra.mxu0 %v481
    %606 = vmatprep.subr.bf16.mxu0 0
    %607 = vmatpush1.bf16.msra.mxu0 %v482
    %608 = vmatprep.subr.bf16.mxu0 0
    %609 = vmatpush1.bf16.msra.mxu0 %v483
    %610 = vmatprep.subr.bf16.mxu0 0
    %611 = vmatpush1.bf16.msra.mxu0 %v484
    %612 = vmatprep.subr.bf16.mxu0 0
    %613 = vmatpush1.bf16.msra.mxu0 %v485
    %614 = vmatprep.mubr.bf16.mxu0 %v233
    %615 = vmatmul.mubr.bf16.gmra.mrb[0].mxu0 %v232
    %v616 = vpop.f32.mrb[0].mxu0
    %v617 = vadd.f32 %v216, %v616
    %v618 = vpop.f32.mrb[0].mxu0
    %v619 = vpop.f32.mrb[0].mxu0
    %v620 = vpop.f32.mrb[0].mxu0
    %621 = vdwg.mxu0
    %622 = vmatprep.subr.bf16.mxu0 0
    %623 = vmatpush1.bf16.msra.mxu0 %v486
    %624 = vmatprep.subr.bf16.mxu0 0
    %625 = vmatpush1.bf16.msra.mxu0 %v487
    %626 = vmatprep.subr.bf16.mxu0 0
    %627 = vmatpush1.bf16.msra.mxu0 %v488
    %628 = vmatprep.subr.bf16.mxu0 0
    %629 = vmatpush1.bf16.msra.mxu0 %v489
    %630 = vmatprep.subr.bf16.mxu0 0
    %631 = vmatpush1.bf16.msra.mxu0 %v490
    %632 = vmatprep.subr.bf16.mxu0 0
    %633 = vmatpush1.bf16.msra.mxu0 %v491
    %634 = vmatprep.subr.bf16.mxu0 0
    %635 = vmatpush1.bf16.msra.mxu0 %v492
    %636 = vmatprep.subr.bf16.mxu0 0
    %637 = vmatpush1.bf16.msra.mxu0 %v493
    %638 = vmatprep.subr.bf16.mxu0 0
    %639 = vmatpush1.bf16.msra.mxu0 %v494
    %640 = vmatprep.subr.bf16.mxu0 0
    %641 = vmatpush1.bf16.msra.mxu0 %v495
    %642 = vmatprep.subr.bf16.mxu0 0
    %643 = vmatpush1.bf16.msra.mxu0 %v496
    %644 = vmatprep.subr.bf16.mxu0 0
    %645 = vmatpush1.bf16.msra.mxu0 %v497
    %646 = vmatprep.subr.bf16.mxu0 0
    %647 = vmatpush1.bf16.msra.mxu0 %v498
    %648 = vmatprep.subr.bf16.mxu0 0
    %649 = vmatpush1.bf16.msra.mxu0 %v499
    %650 = vmatprep.subr.bf16.mxu0 0
    %651 = vmatpush1.bf16.msra.mxu0 %v500
    %652 = vmatprep.subr.bf16.mxu0 0
    %653 = vmatpush1.bf16.msra.mxu0 %v501
    %654 = vmatprep.mubr.bf16.mxu0 %v235
    %655 = vmatmul.mubr.bf16.gmra.mrb[0].mxu0 %v234
    %v656 = vpop.f32.mrb[0].mxu0
    %v657 = vadd.f32 %v617, %v656
    %v658 = vpop.f32.mrb[0].mxu0
    %v659 = vpop.f32.mrb[0].mxu0
    %v660 = vpop.f32.mrb[0].mxu0
    %661 = vdwg.mxu0
    %662 = vmatprep.subr.bf16.mxu0 0
    %663 = vmatpush1.bf16.msra.mxu0 %v502
    %664 = vmatprep.subr.bf16.mxu0 0
    %665 = vmatpush1.bf16.msra.mxu0 %v503
    %666 = vmatprep.subr.bf16.mxu0 0
    %667 = vmatpush1.bf16.msra.mxu0 %v504
    %668 = vmatprep.subr.bf16.mxu0 0
    %669 = vmatpush1.bf16.msra.mxu0 %v505
    %670 = vmatprep.subr.bf16.mxu0 0
    %671 = vmatpush1.bf16.msra.mxu0 %v506
    %672 = vmatprep.subr.bf16.mxu0 0
    %673 = vmatpush1.bf16.msra.mxu0 %v507
    %674 = vmatprep.subr.bf16.mxu0 0
    %675 = vmatpush1.bf16.msra.mxu0 %v508
    %676 = vmatprep.subr.bf16.mxu0 0
    %677 = vmatpush1.bf16.msra.mxu0 %v509
    %678 = vmatprep.subr.bf16.mxu0 0
    %679 = vmatpush1.bf16.msra.mxu0 %v510
    %680 = vmatprep.subr.bf16.mxu0 0
    %681 = vmatpush1.bf16.msra.mxu0 %v511
    %682 = vmatprep.subr.bf16.mxu0 0
    %683 = vmatpush1.bf16.msra.mxu0 %v512
    %684 = vmatprep.subr.bf16.mxu0 0
    %685 = vmatpush1.bf16.msra.mxu0 %v513
    %686 = vmatprep.subr.bf16.mxu0 0
    %687 = vmatpush1.bf16.msra.mxu0 %v514
    %688 = vmatprep.subr.bf16.mxu0 0
    %689 = vmatpush1.bf16.msra.mxu0 %v515
    %690 = vmatprep.subr.bf16.mxu0 0
    %691 = vmatpush1.bf16.msra.mxu0 %v516
    %692 = vmatprep.subr.bf16.mxu0 0
    %693 = vmatpush1.bf16.msra.mxu0 %v517
    %694 = vmatprep.mubr.bf16.mxu0 %v237
    %695 = vmatmul.mubr.bf16.gmra.mrb[0].mxu0 %v236
    %v696 = vpop.f32.mrb[0].mxu0
    %v697 = vadd.f32 %v657, %v696
    %v698 = vpop.f32.mrb[0].mxu0
    %v699 = vpop.f32.mrb[0].mxu0
    %v700 = vpop.f32.mrb[0].mxu0
    %701 = vdwg.mxu0
    %702 = vmatprep.subr.bf16.mxu0 0
    %703 = vmatpush1.bf16.msra.mxu0 %v518
    %704 = vmatprep.subr.bf16.mxu0 0
    %705 = vmatpush1.bf16.msra.mxu0 %v519
    %706 = vmatprep.subr.bf16.mxu0 0
    %707 = vmatpush1.bf16.msra.mxu0 %v520
    %708 = vmatprep.subr.bf16.mxu0 0
    %709 = vmatpush1.bf16.msra.mxu0 %v521
    %710 = vmatprep.subr.bf16.mxu0 0
    %711 = vmatpush1.bf16.msra.mxu0 %v522
    %712 = vmatprep.subr.bf16.mxu0 0
    %713 = vmatpush1.bf16.msra.mxu0 %v523
    %714 = vmatprep.subr.bf16.mxu0 0
    %715 = vmatpush1.bf16.msra.mxu0 %v524
    %716 = vmatprep.subr.bf16.mxu0 0
    %717 = vmatpush1.bf16.msra.mxu0 %v525
    %718 = vmatprep.subr.bf16.mxu0 0
    %719 = vmatpush1.bf16.msra.mxu0 0
    %720 = vmatprep.subr.bf16.mxu0 0
    %721 = vmatpush1.bf16.msra.mxu0 0
    %722 = vmatprep.subr.bf16.mxu0 0
    %723 = vmatpush1.bf16.msra.mxu0 0
    %724 = vmatprep.subr.bf16.mxu0 0
    %725 = vmatpush1.bf16.msra.mxu0 0
    %726 = vmatprep.subr.bf16.mxu0 0
    %727 = vmatpush1.bf16.msra.mxu0 0
    %728 = vmatprep.subr.bf16.mxu0 0
    %729 = vmatpush1.bf16.msra.mxu0 0
    %730 = vmatprep.subr.bf16.mxu0 0
    %731 = vmatpush1.bf16.msra.mxu0 0
    %732 = vmatprep.subr.bf16.mxu0 0
    %733 = vmatpush1.bf16.msra.mxu0 0
    %734 = vmatprep.mubr.bf16.mxu0 0
    %735 = vmatmul.mubr.bf16.gmra.mrb[0].mxu0 %v238
    %v736 = vpop.f32.mrb[0].mxu0
    %v737 = vadd.f32 %v697, %v736
    %v738 = vpop.f32.mrb[0].mxu0
    %v739 = vpop.f32.mrb[0].mxu0
    %v740 = vpop.f32.mrb[0].mxu0
    %741 = vdwg.mxu0
    %v742 = vld [vmem:[%s5] sm:$0x1]
    %v744 = vlaneseq
    %v745 = vshrl.u32 %v744, 7
    %v746 = vsub.s32 0, %v745
    %v747 = vrot.slane %v742, %v746
    %v749 = vadd.f32 %v737, %v747
    %v750 = vmax.f32 %v749, 0.0
    %v751 = vpack.c.bf16 %v750, %v750
    %v752 = vld [vmem:[%s6] sm:$0xf]
    %v753 = vld [vmem:[%s6 + $0x4] sm:$0xf]
    %v754 = vld [vmem:[%s6 + $0x8] sm:$0xf]
    %v755 = vld [vmem:[%s6 + $0xc] sm:$0xf]
    %v756 = vld [vmem:[%s7] sm:$0x1]
    %v758 = vlaneseq
    %v759 = vshrl.u32 %v758, 7
    %v760 = vsub.s32 0, %v759
    %v761 = vrot.slane %v756, %v760
    %v767 = vunpack.c.l.b16 %v752
    %v768 = vunpack.c.l.b16 %v753
    %v769 = vunpack.c.l.b16 %v754
    %v770 = vunpack.c.l.b16 %v755
    %v771 = vpack.c.b16 %v768, %v767
    %v772 = vpack.c.b16 %v770, %v769
    %vm775 = vcmask 261120
    %v777 = vsel %vm775, %v751, 0
    %779 = vmatprep.subr.bf16.mxu0 0
    %780 = vmatpush1.bf16.msra.mxu0 %v771
    %781 = vmatprep.subr.bf16.mxu0 0
    %782 = vmatpush1.bf16.msra.mxu0 %v772
    %783 = vmatprep.subr.bf16.mxu0 0
    %784 = vmatpush1.bf16.msra.mxu0 0
    %785 = vmatprep.subr.bf16.mxu0 0
    %786 = vmatpush1.bf16.msra.mxu0 0
    %787 = vmatprep.subr.bf16.mxu0 0
    %788 = vmatpush1.bf16.msra.mxu0 0
    %789 = vmatprep.subr.bf16.mxu0 0
    %790 = vmatpush1.bf16.msra.mxu0 0
    %791 = vmatprep.subr.bf16.mxu0 0
    %792 = vmatpush1.bf16.msra.mxu0 0
    %793 = vmatprep.subr.bf16.mxu0 0
    %794 = vmatpush1.bf16.msra.mxu0 0
    %795 = vmatprep.subr.bf16.mxu0 0
    %796 = vmatpush1.bf16.msra.mxu0 0
    %797 = vmatprep.subr.bf16.mxu0 0
    %798 = vmatpush1.bf16.msra.mxu0 0
    %799 = vmatprep.subr.bf16.mxu0 0
    %800 = vmatpush1.bf16.msra.mxu0 0
    %801 = vmatprep.subr.bf16.mxu0 0
    %802 = vmatpush1.bf16.msra.mxu0 0
    %803 = vmatprep.subr.bf16.mxu0 0
    %804 = vmatpush1.bf16.msra.mxu0 0
    %805 = vmatprep.subr.bf16.mxu0 0
    %806 = vmatpush1.bf16.msra.mxu0 0
    %807 = vmatprep.subr.bf16.mxu0 0
    %808 = vmatpush1.bf16.msra.mxu0 0
    %809 = vmatprep.subr.bf16.mxu0 0
    %810 = vmatpush1.bf16.msra.mxu0 0
    %811 = vmatprep.mubr.bf16.mxu0 0
    %812 = vmatmul.mubr.bf16.gmra.mrb[0].mxu0 %v777
    %v813 = vpop.f32.mrb[0].mxu0
    %v814 = vadd.f32 %v761, %v813
    %v815 = vpop.f32.mrb[0].mxu0
    %v816 = vpop.f32.mrb[0].mxu0
    %v817 = vpop.f32.mrb[0].mxu0
    %818 = vdwg.mxu0
    %819 = vst [vmem:[#allocation4] sm:$0xff] %v814
    %v820 = vmul.f32 %v814, 0.5
    %v821 = vmul.f32 %v820, 1.442695
    %v822 = vpow.pop %v821
    %v823 = vld [vmem:[%s2] sm:$0xff]
    %825 = vrot.lane.b32.xlu0 %v822, 120
    %v826 = vpop.permute.xlu0 %825
    %v828 = vmul.f32 %v823, %v826
    %v829 = vadd.f32 %v828, %v814
    %v830 = vpack.c.bf16 %v829, %v829
    %v831 = vld [vmem:[%s8] sm:$0xf]
    %v832 = vld [vmem:[%s9] sm:$0xf]
    %v833 = vld [vmem:[%s9 + $0x4] sm:$0x1]
    %v836 = vunpack.c.l.b16 %v832
    %v837 = vunpack.c.l.b16 %v833
    %v838 = vpack.c.b16 %v837, %v836
    %v840 = vsel %vm177, %v838, 0
    %842 = vmatprep.subr.bf16.mxu0 0
    %843 = vmatpush1.bf16.msra.mxu0 %v840
    %844 = vmatprep.subr.bf16.mxu0 0
    %845 = vmatpush1.bf16.msra.mxu0 0
    %846 = vmatprep.subr.bf16.mxu0 0
    %847 = vmatpush1.bf16.msra.mxu0 0
    %848 = vmatprep.subr.bf16.mxu0 0
    %849 = vmatpush1.bf16.msra.mxu0 0
    %850 = vmatprep.subr.bf16.mxu0 0
    %851 = vmatpush1.bf16.msra.mxu0 0
    %852 = vmatprep.subr.bf16.mxu0 0
    %853 = vmatpush1.bf16.msra.mxu0 0
    %854 = vmatprep.subr.bf16.mxu0 0
    %855 = vmatpush1.bf16.msra.mxu0 0
    %856 = vmatprep.subr.bf16.mxu0 0
    %857 = vmatpush1.bf16.msra.mxu0 0
    %858 = vmatprep.subr.bf16.mxu0 0
    %859 = vmatpush1.bf16.msra.mxu0 0
    %860 = vmatprep.subr.bf16.mxu0 0
    %861 = vmatpush1.bf16.msra.mxu0 0
    %862 = vmatprep.subr.bf16.mxu0 0
    %863 = vmatpush1.bf16.msra.mxu0 0
    %864 = vmatprep.subr.bf16.mxu0 0
    %865 = vmatpush1.bf16.msra.mxu0 0
    %866 = vmatprep.subr.bf16.mxu0 0
    %867 = vmatpush1.bf16.msra.mxu0 0
    %868 = vmatprep.subr.bf16.mxu0 0
    %869 = vmatpush1.bf16.msra.mxu0 0
    %870 = vmatprep.subr.bf16.mxu0 0
    %871 = vmatpush1.bf16.msra.mxu0 0
    %872 = vmatprep.subr.bf16.mxu0 0
    %873 = vmatpush1.bf16.msra.mxu0 0
    %874 = vmatprep.mubr.bf16.mxu0 0
    %875 = vmatmul.mubr.bf16.gmra.mrb[0].mxu0 %v175
    %v876 = vpop.f32.mrb[0].mxu0
    %v877 = vadd.f32 0.0, %v876
    %v878 = vpop.f32.mrb[0].mxu0
    %v879 = vpop.f32.mrb[0].mxu0
    %v880 = vpop.f32.mrb[0].mxu0
    %881 = vdwg.mxu0
    %vm882 = vcmask 64512
    %v884 = vsel %vm882, %v830, 0
    %vm886 = vcmask 1043456
    %v888 = vsel %vm886, %v831, 0
    %890 = vmatprep.subr.bf16.mxu0 0
    %891 = vmatpush1.bf16.msra.mxu0 %v888
    %892 = vmatprep.subr.bf16.mxu0 0
    %893 = vmatpush1.bf16.msra.mxu0 0
    %894 = vmatprep.subr.bf16.mxu0 0
    %895 = vmatpush1.bf16.msra.mxu0 0
    %896 = vmatprep.subr.bf16.mxu0 0
    %897 = vmatpush1.bf16.msra.mxu0 0
    %898 = vmatprep.subr.bf16.mxu0 0
    %899 = vmatpush1.bf16.msra.mxu0 0
    %900 = vmatprep.subr.bf16.mxu0 0
    %901 = vmatpush1.bf16.msra.mxu0 0
    %902 = vmatprep.subr.bf16.mxu0 0
    %903 = vmatpush1.bf16.msra.mxu0 0
    %904 = vmatprep.subr.bf16.mxu0 0
    %905 = vmatpush1.bf16.msra.mxu0 0
    %906 = vmatprep.subr.bf16.mxu0 0
    %907 = vmatpush1.bf16.msra.mxu0 0
    %908 = vmatprep.subr.bf16.mxu0 0
    %909 = vmatpush1.bf16.msra.mxu0 0
    %910 = vmatprep.subr.bf16.mxu0 0
    %911 = vmatpush1.bf16.msra.mxu0 0
    %912 = vmatprep.subr.bf16.mxu0 0
    %913 = vmatpush1.bf16.msra.mxu0 0
    %914 = vmatprep.subr.bf16.mxu0 0
    %915 = vmatpush1.bf16.msra.mxu0 0
    %916 = vmatprep.subr.bf16.mxu0 0
    %917 = vmatpush1.bf16.msra.mxu0 0
    %918 = vmatprep.subr.bf16.mxu0 0
    %919 = vmatpush1.bf16.msra.mxu0 0
    %920 = vmatprep.subr.bf16.mxu0 0
    %921 = vmatpush1.bf16.msra.mxu0 0
    %922 = vmatprep.mubr.bf16.mxu0 0
    %923 = vmatmul.mubr.bf16.gmra.mrb[0].mxu0 %v884
    %v924 = vpop.f32.mrb[0].mxu0
    %v925 = vadd.f32 %v877, %v924
    %v926 = vpop.f32.mrb[0].mxu0
    %v927 = vpop.f32.mrb[0].mxu0
    %v928 = vpop.f32.mrb[0].mxu0
    %929 = vdwg.mxu0
    %v930 = vld [vmem:[%s10] sm:$0x1]
    %v932 = vlaneseq
    %v933 = vshrl.u32 %v932, 7
    %v934 = vsub.s32 0, %v933
    %v935 = vrot.slane %v930, %v934
    %v937 = vadd.f32 %v925, %v935
    %v938 = vmax.f32 %v937, 0.0
    %v939 = vpack.c.bf16 %v938, %v938
    %v940 = vld [vmem:[%s11] sm:$0xff]
    %v941 = vld [vmem:[%s11 + $0x8] sm:$0xff]
    %v942 = vld [vmem:[%s11 + $0x10] sm:$0xff]
    %v943 = vld [vmem:[%s11 + $0x18] sm:$0xf]
    %v944 = vld [vmem:[%s11 + $0x1c] sm:$0xff]
    %v945 = vld [vmem:[%s11 + $0x24] sm:$0xff]
    %v946 = vld [vmem:[%s11 + $0x2c] sm:$0xff]
    %v947 = vld [vmem:[%s11 + $0x34] sm:$0xf]
    %v948 = vld [vmem:[%s11 + $0x38] sm:$0xff]
    %v949 = vld [vmem:[%s11 + $0x40] sm:$0xff]
    %v950 = vld [vmem:[%s11 + $0x48] sm:$0xff]
    %v951 = vld [vmem:[%s11 + $0x50] sm:$0xf]
    %v952 = vld [vmem:[%s11 + $0x54] sm:$0xff]
    %v953 = vld [vmem:[%s11 + $0x5c] sm:$0xff]
    %v954 = vld [vmem:[%s11 + $0x64] sm:$0xff]
    %v955 = vld [vmem:[%s11 + $0x6c] sm:$0xf]
    %v956 = vld [vmem:[%s12] sm:$0xff]
    %v958 = vlaneseq
    %v959 = vshrl.u32 %v958, 7
    %v960 = vsub.s32 0, %v959
    %v961 = vrot.slane %v956, %v960
    %v962 = vlaneseq
    %v963 = vshrl.u32 %v962, 7
    %v964 = vsub.s32 1, %v963
    %v965 = vrot.slane %v956, %v964
    %v966 = vlaneseq
    %v967 = vshrl.u32 %v966, 7
    %v968 = vsub.s32 2, %v967
    %v969 = vrot.slane %v956, %v968
    %v970 = vlaneseq
    %v971 = vshrl.u32 %v970, 7
    %v972 = vsub.s32 3, %v971
    %v973 = vrot.slane %v956, %v972
    %v974 = vlaneseq
    %v975 = vshrl.u32 %v974, 7
    %v976 = vsub.s32 4, %v975
    %v977 = vrot.slane %v956, %v976
    %v978 = vlaneseq
    %v979 = vshrl.u32 %v978, 7
    %v980 = vsub.s32 5, %v979
    %v981 = vrot.slane %v956, %v980
    %v982 = vlaneseq
    %v983 = vshrl.u32 %v982, 7
    %v984 = vsub.s32 6, %v983
    %v985 = vrot.slane %v956, %v984
    %v1009 = vunpack.c.l.b16 %v940
    %v1010 = vunpack.c.h.b16 %v940
    %v1011 = vunpack.c.l.b16 %v941
    %v1012 = vunpack.c.h.b16 %v941
    %v1013 = vunpack.c.l.b16 %v942
    %v1014 = vunpack.c.h.b16 %v942
    %v1015 = vunpack.c.l.b16 %v943
    %v1016 = vunpack.c.l.b16 %v944
    %v1017 = vunpack.c.h.b16 %v944
    %v1018 = vunpack.c.l.b16 %v945
    %v1019 = vunpack.c.h.b16 %v945
    %v1020 = vunpack.c.l.b16 %v946
    %v1021 = vunpack.c.h.b16 %v946
    %v1022 = vunpack.c.l.b16 %v947
    %v1023 = vunpack.c.l.b16 %v948
    %v1024 = vunpack.c.h.b16 %v948
    %v1025 = vunpack.c.l.b16 %v949
    %v1026 = vunpack.c.h.b16 %v949
    %v1027 = vunpack.c.l.b16 %v950
    %v1028 = vunpack.c.h.b16 %v950
    %v1029 = vunpack.c.l.b16 %v951
    %v1030 = vunpack.c.l.b16 %v952
    %v1031 = vunpack.c.h.b16 %v952
    %v1032 = vunpack.c.l.b16 %v953
    %v1033 = vunpack.c.h.b16 %v953
    %v1034 = vunpack.c.l.b16 %v954
    %v1035 = vunpack.c.h.b16 %v954
    %v1036 = vunpack.c.l.b16 %v955
    %v1037 = vpack.c.b16 %v1016, %v1009
    %v1038 = vpack.c.b16 %v1017, %v1010
    %v1039 = vpack.c.b16 %v1018, %v1011
    %v1040 = vpack.c.b16 %v1019, %v1012
    %v1041 = vpack.c.b16 %v1020, %v1013
    %v1042 = vpack.c.b16 %v1021, %v1014
    %v1043 = vpack.c.b16 %v1022, %v1015
    %v1044 = vpack.c.b16 %v1030, %v1023
    %v1045 = vpack.c.b16 %v1031, %v1024
    %v1046 = vpack.c.b16 %v1032, %v1025
    %v1047 = vpack.c.b16 %v1033, %v1026
    %v1048 = vpack.c.b16 %v1034, %v1027
    %v1049 = vpack.c.b16 %v1035, %v1028
    %v1050 = vpack.c.b16 %v1036, %v1029
    %v1066 = vsel %vm775, %v939, 0
    %1068 = vmatprep.subr.bf16.mxu0 %v1038
    %1069 = vmatpush1.bf16.msra.mxu0 %v1037
    %1070 = vmatprep.subr.bf16.mxu0 %v1045
    %1071 = vmatpush1.bf16.msra.mxu0 %v1044
    %1072 = vmatprep.subr.bf16.mxu0 0
    %1073 = vmatpush1.bf16.msra.mxu0 0
    %1074 = vmatprep.subr.bf16.mxu0 0
    %1075 = vmatpush1.bf16.msra.mxu0 0
    %1076 = vmatprep.subr.bf16.mxu0 0
    %1077 = vmatpush1.bf16.msra.mxu0 0
    %1078 = vmatprep.subr.bf16.mxu0 0
    %1079 = vmatpush1.bf16.msra.mxu0 0
    %1080 = vmatprep.subr.bf16.mxu0 0
    %1081 = vmatpush1.bf16.msra.mxu0 0
    %1082 = vmatprep.subr.bf16.mxu0 0
    %1083 = vmatpush1.bf16.msra.mxu0 0
    %1084 = vmatprep.subr.bf16.mxu0 0
    %1085 = vmatpush1.bf16.msra.mxu0 0
    %1086 = vmatprep.subr.bf16.mxu0 0
    %1087 = vmatpush1.bf16.msra.mxu0 0
    %1088 = vmatprep.subr.bf16.mxu0 0
    %1089 = vmatpush1.bf16.msra.mxu0 0
    %1090 = vmatprep.subr.bf16.mxu0 0
    %1091 = vmatpush1.bf16.msra.mxu0 0
    %1092 = vmatprep.subr.bf16.mxu0 0
    %1093 = vmatpush1.bf16.msra.mxu0 0
    %1094 = vmatprep.subr.bf16.mxu0 0
    %1095 = vmatpush1.bf16.msra.mxu0 0
    %1096 = vmatprep.subr.bf16.mxu0 0
    %1097 = vmatpush1.bf16.msra.mxu0 0
    %1098 = vmatprep.subr.bf16.mxu0 0
    %1099 = vmatpush1.bf16.msra.mxu0 0
    %1100 = vmatprep.mubr.bf16.mxu0 0
    %1101 = vmatmul.mubr.bf16.gmra.mrb[0].mxu0 %v1066
    %v1102 = vpop.f32.mrb[0].mxu0
    %v1103 = vadd.f32 %v961, %v1102
    %v1104 = vpop.f32.mrb[0].mxu0
    %v1105 = vadd.f32 %v965, %v1104
    %v1106 = vpop.f32.mrb[0].mxu0
    %v1107 = vpop.f32.mrb[0].mxu0
    %1108 = vdwg.mxu0
    %1109 = vmatprep.subr.bf16.mxu0 %v1040
    %1110 = vmatpush1.bf16.msra.mxu0 %v1039
    %1111 = vmatprep.subr.bf16.mxu0 %v1047
    %1112 = vmatpush1.bf16.msra.mxu0 %v1046
    %1113 = vmatprep.subr.bf16.mxu0 0
    %1114 = vmatpush1.bf16.msra.mxu0 0
    %1115 = vmatprep.subr.bf16.mxu0 0
    %1116 = vmatpush1.bf16.msra.mxu0 0
    %1117 = vmatprep.subr.bf16.mxu0 0
    %1118 = vmatpush1.bf16.msra.mxu0 0
    %1119 = vmatprep.subr.bf16.mxu0 0
    %1120 = vmatpush1.bf16.msra.mxu0 0
    %1121 = vmatprep.subr.bf16.mxu0 0
    %1122 = vmatpush1.bf16.msra.mxu0 0
    %1123 = vmatprep.subr.bf16.mxu0 0
    %1124 = vmatpush1.bf16.msra.mxu0 0
    %1125 = vmatprep.subr.bf16.mxu0 0
    %1126 = vmatpush1.bf16.msra.mxu0 0
    %1127 = vmatprep.subr.bf16.mxu0 0
    %1128 = vmatpush1.bf16.msra.mxu0 0
    %1129 = vmatprep.subr.bf16.mxu0 0
    %1130 = vmatpush1.bf16.msra.mxu0 0
    %1131 = vmatprep.subr.bf16.mxu0 0
    %1132 = vmatpush1.bf16.msra.mxu0 0
    %1133 = vmatprep.subr.bf16.mxu0 0
    %1134 = vmatpush1.bf16.msra.mxu0 0
    %1135 = vmatprep.subr.bf16.mxu0 0
    %1136 = vmatpush1.bf16.msra.mxu0 0
    %1137 = vmatprep.subr.bf16.mxu0 0
    %1138 = vmatpush1.bf16.msra.mxu0 0
    %1139 = vmatprep.subr.bf16.mxu0 0
    %1140 = vmatpush1.bf16.msra.mxu0 0
    %1141 = vmatprep.mubr.bf16.mxu0 0
    %1142 = vmatmul.mubr.bf16.gmra.mrb[0].mxu0 %v1066
    %v1143 = vpop.f32.mrb[0].mxu0
    %v1144 = vadd.f32 %v969, %v1143
    %v1145 = vpop.f32.mrb[0].mxu0
    %v1146 = vadd.f32 %v973, %v1145
    %v1147 = vpop.f32.mrb[0].mxu0
    %v1148 = vpop.f32.mrb[0].mxu0
    %1149 = vdwg.mxu0
    %1150 = vmatprep.subr.bf16.mxu0 %v1042
    %1151 = vmatpush1.bf16.msra.mxu0 %v1041
    %1152 = vmatprep.subr.bf16.mxu0 %v1049
    %1153 = vmatpush1.bf16.msra.mxu0 %v1048
    %1154 = vmatprep.subr.bf16.mxu0 0
    %1155 = vmatpush1.bf16.msra.mxu0 0
    %1156 = vmatprep.subr.bf16.mxu0 0
    %1157 = vmatpush1.bf16.msra.mxu0 0
    %1158 = vmatprep.subr.bf16.mxu0 0
    %1159 = vmatpush1.bf16.msra.mxu0 0
    %1160 = vmatprep.subr.bf16.mxu0 0
    %1161 = vmatpush1.bf16.msra.mxu0 0
    %1162 = vmatprep.subr.bf16.mxu0 0
    %1163 = vmatpush1.bf16.msra.mxu0 0
    %1164 = vmatprep.subr.bf16.mxu0 0
    %1165 = vmatpush1.bf16.msra.mxu0 0
    %1166 = vmatprep.subr.bf16.mxu0 0
    %1167 = vmatpush1.bf16.msra.mxu0 0
    %1168 = vmatprep.subr.bf16.mxu0 0
    %1169 = vmatpush1.bf16.msra.mxu0 0
    %1170 = vmatprep.subr.bf16.mxu0 0
    %1171 = vmatpush1.bf16.msra.mxu0 0
    %1172 = vmatprep.subr.bf16.mxu0 0
    %1173 = vmatpush1.bf16.msra.mxu0 0
    %1174 = vmatprep.subr.bf16.mxu0 0
    %1175 = vmatpush1.bf16.msra.mxu0 0
    %1176 = vmatprep.subr.bf16.mxu0 0
    %1177 = vmatpush1.bf16.msra.mxu0 0
    %1178 = vmatprep.subr.bf16.mxu0 0
    %1179 = vmatpush1.bf16.msra.mxu0 0
    %1180 = vmatprep.subr.bf16.mxu0 0
    %1181 = vmatpush1.bf16.msra.mxu0 0
    %1182 = vmatprep.mubr.bf16.mxu0 0
    %1183 = vmatmul.mubr.bf16.gmra.mrb[0].mxu0 %v1066
    %v1184 = vpop.f32.mrb[0].mxu0
    %v1185 = vadd.f32 %v977, %v1184
    %v1186 = vpop.f32.mrb[0].mxu0
    %v1187 = vadd.f32 %v981, %v1186
    %v1188 = vpop.f32.mrb[0].mxu0
    %v1189 = vpop.f32.mrb[0].mxu0
    %1190 = vdwg.mxu0
    %1191 = vmatprep.subr.bf16.mxu0 0
    %1192 = vmatpush1.bf16.msra.mxu0 %v1043
    %1193 = vmatprep.subr.bf16.mxu0 0
    %1194 = vmatpush1.bf16.msra.mxu0 %v1050
    %1195 = vmatprep.subr.bf16.mxu0 0
    %1196 = vmatpush1.bf16.msra.mxu0 0
    %1197 = vmatprep.subr.bf16.mxu0 0
    %1198 = vmatpush1.bf16.msra.mxu0 0
    %1199 = vmatprep.subr.bf16.mxu0 0
    %1200 = vmatpush1.bf16.msra.mxu0 0
    %1201 = vmatprep.subr.bf16.mxu0 0
    %1202 = vmatpush1.bf16.msra.mxu0 0
    %1203 = vmatprep.subr.bf16.mxu0 0
    %1204 = vmatpush1.bf16.msra.mxu0 0
    %1205 = vmatprep.subr.bf16.mxu0 0
    %1206 = vmatpush1.bf16.msra.mxu0 0
    %1207 = vmatprep.subr.bf16.mxu0 0
    %1208 = vmatpush1.bf16.msra.mxu0 0
    %1209 = vmatprep.subr.bf16.mxu0 0
    %1210 = vmatpush1.bf16.msra.mxu0 0
    %1211 = vmatprep.subr.bf16.mxu0 0
    %1212 = vmatpush1.bf16.msra.mxu0 0
    %1213 = vmatprep.subr.bf16.mxu0 0
    %1214 = vmatpush1.bf16.msra.mxu0 0
    %1215 = vmatprep.subr.bf16.mxu0 0
    %1216 = vmatpush1.bf16.msra.mxu0 0
    %1217 = vmatprep.subr.bf16.mxu0 0
    %1218 = vmatpush1.bf16.msra.mxu0 0
    %1219 = vmatprep.subr.bf16.mxu0 0
    %1220 = vmatpush1.bf16.msra.mxu0 0
    %1221 = vmatprep.subr.bf16.mxu0 0
    %1222 = vmatpush1.bf16.msra.mxu0 0
    %1223 = vmatprep.mubr.bf16.mxu0 0
    %1224 = vmatmul.mubr.bf16.gmra.mrb[0].mxu0 %v1066
    %v1225 = vpop.f32.mrb[0].mxu0
    %v1226 = vadd.f32 %v985, %v1225
    %v1227 = vpop.f32.mrb[0].mxu0
    %v1228 = vpop.f32.mrb[0].mxu0
    %v1229 = vpop.f32.mrb[0].mxu0
    %1230 = vdwg.mxu0
    %v1231 = vmul.f32 %v1103, 0.5
    %v1232 = vmul.f32 %v1105, 0.5
    %v1233 = vmul.f32 %v1144, 0.5
    %v1234 = vmul.f32 %v1146, 0.5
    %v1235 = vmul.f32 %v1185, 0.5
    %v1236 = vmul.f32 %v1187, 0.5
    %v1237 = vmul.f32 %v1226, 0.5
    %v1238 = vtanh.pop %v1231
    %v1239 = vtanh.pop %v1232
    %v1240 = vtanh.pop %v1233
    %v1241 = vtanh.pop %v1234
    %v1242 = vtanh.pop %v1235
    %v1243 = vtanh.pop %v1236
    %v1244 = vtanh.pop %v1237
    %v1245 = vmul.f32 %v1238, 0.5
    %v1246 = vmul.f32 %v1239, 0.5
    %v1247 = vmul.f32 %v1240, 0.5
    %v1248 = vmul.f32 %v1241, 0.5
    %v1249 = vmul.f32 %v1242, 0.5
    %v1250 = vmul.f32 %v1243, 0.5
    %v1251 = vmul.f32 %v1244, 0.5
    %v1252 = vadd.f32 %v1245, 0.5
    %v1253 = vadd.f32 %v1246, 0.5
    %v1254 = vadd.f32 %v1247, 0.5
    %v1255 = vadd.f32 %v1248, 0.5
    %v1256 = vadd.f32 %v1249, 0.5
    %v1257 = vadd.f32 %v1250, 0.5
    %v1258 = vadd.f32 %v1251, 0.5
    %v1259 = vpack.c.bf16 %v1252, %v1252
    %v1260 = vpack.c.bf16 %v1253, %v1253
    %v1261 = vpack.c.bf16 %v1254, %v1254
    %v1262 = vpack.c.bf16 %v1255, %v1255
    %v1263 = vpack.c.bf16 %v1256, %v1256
    %v1264 = vpack.c.bf16 %v1257, %v1257
    %v1265 = vpack.c.bf16 %v1258, %v1258
    %v1273 = vunpack.c.l.b16 %v1259
    %v1274 = vunpack.c.l.b16 %v1260
    %v1275 = vunpack.c.l.b16 %v1261
    %v1276 = vunpack.c.l.b16 %v1262
    %v1277 = vunpack.c.l.b16 %v1263
    %v1278 = vunpack.c.l.b16 %v1264
    %v1279 = vunpack.c.l.b16 %v1265
    %v1280 = vpack.c.b16 %v1274, %v1273
    %v1281 = vpack.c.b16 %v1276, %v1275
    %v1282 = vpack.c.b16 %v1278, %v1277
    %v1283 = vpack.c.b16 %v1279, %v1279
    %1288 = vst [vmem:[#allocation2] sm:$0xff] %v1280
    %1289 = vst [vmem:[#allocation2 + $0x8] sm:$0xff] %v1281
    %1290 = vst [vmem:[#allocation2 + $0x10] sm:$0xff] %v1282
    %1291 = vst [vmem:[#allocation2 + $0x18] sm:$0xf] %v1283
    // Predicated region
    $region54: #{tpu_custom_call.1} parent=1 // pred_check
      _
    $region55: #{tpu_custom_call.1} parent=1 // pred_check_branch
      %1293 = sbr.rel (0) target = $region57
    $region56: #{tpu_custom_call.1} parent=1 // pred_region
      %s1295 = ssub.s32 448, 448
      %1296 = vsyncadd [#allocation3], %s1295
      %s1298 = sshll.u32 [#allocation2], 4
      %s1299 = int_to_ptr.vmem [resolvable:$true] %s1298
      %1301 = dma.vmem_to_hbm [thread:$0]  %s1299, 448, %s13, [#allocation3]
    $region57: #{tpu_custom_call.1} parent=1 // pred_fallthru
      _
    // Predicated region
    $region58: #{tpu_custom_call.1} parent=1 // pred_check
      _
    $region59: #{tpu_custom_call.1} parent=1 // pred_check_branch
      %1303 = sbr.rel (0) target = $region61
    $region60: #{tpu_custom_call.1} parent=1 // pred_region
      %s1305 = ssub.s32 128, 128
      %1306 = vsyncadd [#allocation5], %s1305
      %s1308 = sshll.u32 [#allocation4], 4
      %s1309 = int_to_ptr.vmem [resolvable:$true] %s1308
      %1311 = dma.vmem_to_hbm [thread:$0]  %s1309, 128, %s14, [#allocation5]
    $region61: #{tpu_custom_call.1} parent=1 // pred_fallthru
      _
    // Predicated region
    $region62: #{tpu_custom_call.1} parent=1 // pred_check
      _
    $region63: #{tpu_custom_call.1} parent=1 // pred_check_branch
      %1313 = sbr.rel (0) target = $region65
    $region64: #{tpu_custom_call.1} parent=1 // pred_region
      %1314 = dma.done [#allocation3], 448
    $region65: #{tpu_custom_call.1} parent=1 // pred_fallthru
      _
    // Predicated region
    $region66: #{tpu_custom_call.1} parent=1 // pred_check
      _
    $region67: #{tpu_custom_call.1} parent=1 // pred_check_branch
      %1316 = sbr.rel (0) target = $region69
    $region68: #{tpu_custom_call.1} parent=1 // pred_region
      %1317 = dma.done [#allocation5], 128
    $region69: #{tpu_custom_call.1} parent=1 // pred_fallthru
      _
    %1318 = vsyncpa [#allocation3], 1
    %1319 = vsyncpa [#allocation5], 1

</llo_original>
